<compile_context>
chip_gen: v6e
topology: v6e:2x2x1
jax: 0.10.0
libtpu: 0.0.40
codegen_flags: <defaults>
</compile_context>

<pallas_src>
import functools

import numpy as np
import jax
import jax.numpy as jnp
from jax.experimental import pallas as pl
from jax.experimental.pallas import tpu as pltpu

# ----------------------------- configuration --------------------------------
B       = 2                 # graphs in the batched molecular graph
N_PER   = 8                 # nodes per graph
E_PER   = 16                # directed edges per graph (bidirectional ring)
NT      = B * N_PER         # total nodes   (16)
ET      = B * E_PER         # total edges   (32)

HIDDEN  = 32                # cfg.hidden_dim
HEADS   = 4                 # cfg.num_heads
HH      = HIDDEN * HEADS    # 128

NODE_FEATS = 17             # num_node_feats (no ablations, useFullHyb=False)
EDGE_FEATS = 15             # num_edge_feats (useOld=False)
NF_PAD  = 32                # small sublane-friendly padding for layer-1 inputs
EF_PAD  = 32

EGAT_LAYERS = 2             # cfg.EGAT_layers
MLP1_DIM = 128
MLP2_DIM = 128
OUT_DIM  = 1

LEAKY_SLOPE = 0.01          # F.leaky_relu default (DGL EGATConv)

_VMEM = functools.partial(pl.BlockSpec, memory_space=pltpu.MemorySpace.VMEM)
N_INPUTS = 29               # number of operands to the fused kernel


def _bf16(x):
    return x.astype(jnp.bfloat16)


# --------------------------- fused forward kernel ----------------------------
def fused_forward_kernel(
        h0_ref, f0_ref,
        s_ref, d_ref, dt_ref, blk_ref, pooln_ref, poole_ref,
        wn1_ref, bn1_ref, wf1_ref, bf1_ref, attn1_ref,
        wn2_ref, bn2_ref, wf2_ref, bf2_ref, attn2_ref,
        wan_ref, ban_ref, wae_ref, bae_ref,
        w1n_ref, w1e_ref, b1_ref, w2_ref, b2_ref, w3_ref, b3_ref,
        out_ref):
    """Whole MolecularAblationModel forward in one kernel.

    h0: (NT, NF_PAD)  node feats        f0: (ET, EF_PAD)  edge feats
    S : (ET, NT) one-hot src gather     D : (ET, NT) one-hot dst gather
    DT: (NT, ET) = D^T (scatter-add)    BLK: (HH, HH) per-head reduce+broadcast
    POOL_N: (B, NT), POOL_E: (B, ET)    per-graph sum pooling (dgl.unbatch+sum)
    """
    S = s_ref[...]
    D = d_ref[...]
    DT = dt_ref[...]
    BLK = blk_ref[...]

    def egat(h, f, wn3, bn3, wf, bf, attn):
        # fused node linears: [fc_ni | fc_nj | fc_node] as one (in, 3*HH) matmul
        hw = jnp.dot(_bf16(h), wn3, preferred_element_type=jnp.float32) + bn3
        f_ni = hw[:, 0:HH]
        f_nj = hw[:, HH:2 * HH]
        h_node = hw[:, 2 * HH:3 * HH]
        f_fij = jnp.dot(_bf16(f), wf, preferred_element_type=jnp.float32) + bf

        # f_out[e] = leaky_relu(f_ni[src(e)] + f_nj[dst(e)] + f_fij[e])
        f_sum = (jnp.dot(S, _bf16(f_ni), preferred_element_type=jnp.float32)
                 + jnp.dot(D, _bf16(f_nj), preferred_element_type=jnp.float32)
                 + f_fij)
        f_out = jnp.where(f_sum > 0, f_sum, LEAKY_SLOPE * f_sum)          # (ET, HH)

        # per-head attention logits, replicated across each head's 32 lanes via
        # a lane-dense block-diagonal matmul (no (ET,4) lane-sparse tensors).
        weighted = f_out * attn
        logits = jnp.dot(_bf16(weighted), BLK, preferred_element_type=jnp.float32)
        # edge softmax over incoming edges of each destination node
        # (shift-invariant per group -> a global max is a valid stabilizer)
        logits = logits - jnp.max(logits, keepdims=True)
        ex = jnp.exp(logits)                                              # (ET, HH)
        denom = jnp.dot(DT, _bf16(ex), preferred_element_type=jnp.float32)    # (NT, HH)
        denom_e = jnp.dot(D, _bf16(denom), preferred_element_type=jnp.float32)  # (ET, HH)
        alpha = ex * pl.reciprocal(denom_e, approx=True)

        # h'_i = sum_{e: dst(e)=i} alpha_e * (W_node h_{src(e)})
        h_src = jnp.dot(S, _bf16(h_node), preferred_element_type=jnp.float32)
        msg = h_src * alpha
        h_out = jnp.dot(DT, _bf16(msg), preferred_element_type=jnp.float32)   # (NT, HH)
        return h_out, f_out

    # egat1 on raw features, then egat2 (reused) for the remaining layers,
    # exactly as in the reference forward loop.
    hN, fE = egat(h0_ref[...], f0_ref[...],
                  wn1_ref[...], bn1_ref[...], wf1_ref[...], bf1_ref[...],
                  attn1_ref[...])
    for _ in range(EGAT_LAYERS - 1):
        hN, fE = egat(hN, fE,
                      wn2_ref[...], bn2_ref[...], wf2_ref[...], bf2_ref[...],
                      attn2_ref[...])

    # agg_N_feats / agg_E_feats
    rxn_n = jnp.dot(_bf16(hN), wan_ref[...], preferred_element_type=jnp.float32) + ban_ref[...]
    rxn_e = jnp.dot(_bf16(fE), wae_ref[...], preferred_element_type=jnp.float32) + bae_ref[...]

    # dgl.unbatch + per-graph sum readout as one-hot matmuls
    gn = jnp.dot(pooln_ref[...], _bf16(rxn_n), preferred_element_type=jnp.float32)  # (B, HH)
    ge = jnp.dot(poole_ref[...], _bf16(rxn_e), preferred_element_type=jnp.float32)  # (B, HH)

    # mlp1 on concat([gn, ge], axis=1): W1 split row-wise -> two matmuls + sum
    x = (jnp.dot(_bf16(gn), w1n_ref[...], preferred_element_type=jnp.float32)
         + jnp.dot(_bf16(ge), w1e_ref[...], preferred_element_type=jnp.float32)
         + b1_ref[...])
    x = jnp.maximum(x, 0.0)
    x = jnp.maximum(jnp.dot(_bf16(x), w2_ref[...], preferred_element_type=jnp.float32)
                    + b2_ref[...], 0.0)
    out_ref[...] = (jnp.dot(_bf16(x), w3_ref[...], preferred_element_type=jnp.float32)
                    + b3_ref[...])


def forward(params, h0, f0, consts):
    """Embed==0 -> returns x of shape (B, 1)."""
    e1, e2, hd = params['egat1'], params['egat2'], params['head']
    return pl.pallas_call(
        fused_forward_kernel,
        out_shape=jax.ShapeDtypeStruct((B, OUT_DIM), jnp.float32),
        in_specs=[_VMEM() for _ in range(N_INPUTS)],
        out_specs=_VMEM(),
    )(h0, f0,
      consts['S'], consts['D'], consts['DT'], consts['BLK'],
      consts['POOL_N'], consts['POOL_E'],
      e1['w_n3'], e1['b_n3'], e1['w_f'], e1['b_f'], e1['attn'],
      e2['w_n3'], e2['b_n3'], e2['w_f'], e2['b_f'], e2['attn'],
      hd['w_agg_n'], hd['b_agg_n'], hd['w_agg_e'], hd['b_agg_e'],
      hd['w1n'], hd['w1e'], hd['b1'], hd['w2'], hd['b2'], hd['w3'], hd['b3'])


# ----------------------------- parameter init --------------------------------
def _linear(key, fan_in, fan_out):
    k1, k2 = jax.random.split(key)
    w = jax.random.normal(k1, (fan_in, fan_out), jnp.float32) / np.sqrt(fan_in)
    b = 0.01 * jax.random.normal(k2, (1, fan_out), jnp.float32)
    return w, b


def _init_egat(key, in_n, in_e):
    ks = jax.random.split(key, 5)
    w_ni, b_ni = _linear(ks[0], in_n, HH)
    w_nj, b_nj = _linear(ks[1], in_n, HH)
    w_node, b_node = _linear(ks[2], in_n, HH)
    w_f, b_f = _linear(ks[3], in_e, HH)
    attn = 0.1 * jax.random.normal(ks[4], (1, HH), jnp.float32)
    # pack the three node linears into one weight for a single wide matmul
    w_n3 = jnp.concatenate([w_ni, w_nj, w_node], axis=1).astype(jnp.bfloat16)
    b_n3 = jnp.concatenate([b_ni, b_nj, b_node], axis=1)           # f32
    return dict(w_n3=w_n3, b_n3=b_n3,
                w_f=w_f.astype(jnp.bfloat16), b_f=b_f, attn=attn)


def _init_head(key):
    ks = jax.random.split(key, 5)
    w_agg_n, b_agg_n = _linear(ks[0], HH, HH)
    w_agg_e, b_agg_e = _linear(ks[1], HH, HH)
    w1, b1 = _linear(ks[2], 2 * HH, MLP1_DIM)      # mlp1 acts on concat(node, edge)
    w2, b2 = _linear(ks[3], MLP1_DIM, MLP2_DIM)
    w3, b3 = _linear(ks[4], MLP2_DIM, OUT_DIM)
    bf = jnp.bfloat16
    return dict(w_agg_n=w_agg_n.astype(bf), b_agg_n=b_agg_n,
                w_agg_e=w_agg_e.astype(bf), b_agg_e=b_agg_e,
                w1n=w1[:HH].astype(bf), w1e=w1[HH:].astype(bf), b1=b1,
                w2=w2.astype(bf), b2=b2, w3=w3.astype(bf), b3=b3)


def init_params(key):
    k1, k2, k3 = jax.random.split(key, 3)
    return dict(egat1=_init_egat(k1, NF_PAD, EF_PAD),
                egat2=_init_egat(k2, HH, HH),
                head=_init_head(k3))


# ------------------------ graph structure (glue, numpy) ----------------------
def build_graph_constants():
    src, dst = [], []
    for g in range(B):
        base = g * N_PER
        for i in range(N_PER):                      # bidirectional ring per graph
            j = (i + 1) % N_PER
            src += [base + i, base + j]
            dst += [base + j, base + i]
    src = np.asarray(src)
    dst = np.asarray(dst)

    S = np.zeros((ET, NT), np.float32); S[np.arange(ET), src] = 1.0
    D = np.zeros((ET, NT), np.float32); D[np.arange(ET), dst] = 1.0
    DT = np.ascontiguousarray(D.T)

    POOL_N = np.zeros((B, NT), np.float32)
    POOL_E = np.zeros((B, ET), np.float32)
    for g in range(B):
        POOL_N[g, g * N_PER:(g + 1) * N_PER] = 1.0
        POOL_E[g, g * E_PER:(g + 1) * E_PER] = 1.0

    # block-diagonal (HH, HH): BLK[k, j] = 1 iff channels k, j belong to the
    # same head -> one matmul does the per-head logit sum AND the broadcast
    # back to all 32 lanes of that head (keeps everything 128-lanes dense).
    head_id = np.arange(HH) // HIDDEN
    BLK = (head_id[:, None] == head_id[None, :]).astype(np.float32)

    c = dict(S=S, D=D, DT=DT, BLK=BLK, POOL_N=POOL_N, POOL_E=POOL_E)
    return {k: jnp.asarray(v, dtype=jnp.bfloat16) for k, v in c.items()}


def _pad_feats(x, width):
    return jnp.pad(x, ((0, 0), (0, width - x.shape[1])))


# --------------------------------- main ---------------------------------------
if __name__ == "__main__":
    key = jax.random.PRNGKey(0)
    k_h, k_f, k_p = jax.random.split(key, 3)

    # graphR.ndata['x'] (NT, 17), graphR.edata['x'] (ET, 15), zero-padded to 32
    H0 = _pad_feats(jax.random.normal(k_h, (NT, NODE_FEATS), jnp.float32), NF_PAD)
    F0 = _pad_feats(jax.random.normal(k_f, (ET, EDGE_FEATS), jnp.float32), EF_PAD)

    params = init_params(k_p)
    consts = build_graph_constants()

    fwd = jax.jit(lambda p, h, f: forward(p, h, f, consts))
    x = fwd(params, H0, F0)
    x = jax.block_until_ready(x)

    assert x.shape == (B, OUT_DIM), x.shape
    assert bool(jnp.all(jnp.isfinite(x)))
    # TODO(synk): attention-map branch (getattentionmaps) is never initialised in
    # the reference __init__ and is treated as disabled here (Embed==0 -> return x).
    print("KERNEL_OK")
</pallas_src>

<mosaic_0001>
module attributes {stable_mosaic.version = 11 : i64} {
  func.func @fused_forward_kernel(%arg0: memref<16x32xf32, #tpu.memory_space<vmem>>, %arg1: memref<32x32xf32, #tpu.memory_space<vmem>>, %arg2: memref<32x16xbf16, #tpu.memory_space<vmem>>, %arg3: memref<32x16xbf16, #tpu.memory_space<vmem>>, %arg4: memref<16x32xbf16, #tpu.memory_space<vmem>>, %arg5: memref<128x128xbf16, #tpu.memory_space<vmem>>, %arg6: memref<2x16xbf16, #tpu.memory_space<vmem>>, %arg7: memref<2x32xbf16, #tpu.memory_space<vmem>>, %arg8: memref<32x384xbf16, #tpu.memory_space<vmem>>, %arg9: memref<1x384xf32, #tpu.memory_space<vmem>>, %arg10: memref<32x128xbf16, #tpu.memory_space<vmem>>, %arg11: memref<1x128xf32, #tpu.memory_space<vmem>>, %arg12: memref<1x128xf32, #tpu.memory_space<vmem>>, %arg13: memref<128x384xbf16, #tpu.memory_space<vmem>>, %arg14: memref<1x384xf32, #tpu.memory_space<vmem>>, %arg15: memref<128x128xbf16, #tpu.memory_space<vmem>>, %arg16: memref<1x128xf32, #tpu.memory_space<vmem>>, %arg17: memref<1x128xf32, #tpu.memory_space<vmem>>, %arg18: memref<128x128xbf16, #tpu.memory_space<vmem>>, %arg19: memref<1x128xf32, #tpu.memory_space<vmem>>, %arg20: memref<128x128xbf16, #tpu.memory_space<vmem>>, %arg21: memref<1x128xf32, #tpu.memory_space<vmem>>, %arg22: memref<128x128xbf16, #tpu.memory_space<vmem>>, %arg23: memref<128x128xbf16, #tpu.memory_space<vmem>>, %arg24: memref<1x128xf32, #tpu.memory_space<vmem>>, %arg25: memref<128x128xbf16, #tpu.memory_space<vmem>>, %arg26: memref<1x128xf32, #tpu.memory_space<vmem>>, %arg27: memref<128x1xbf16, #tpu.memory_space<vmem>>, %arg28: memref<1x1xf32, #tpu.memory_space<vmem>>, %arg29: memref<2x1xf32, #tpu.memory_space<vmem>>) attributes {dimension_semantics = [], scalar_prefetch = 0 : i64, scratch_operands = 0 : i64, tpu.core_type = #tpu.core_type<tc>} {
    %c0 = arith.constant 0 : index
    %c0_0 = arith.constant 0 : index
    %0 = vector.load %arg2[%c0, %c0_0] : memref<32x16xbf16, #tpu.memory_space<vmem>>, vector<32x16xbf16>
    %c0_1 = arith.constant 0 : index
    %c0_2 = arith.constant 0 : index
    %1 = vector.load %arg3[%c0_1, %c0_2] : memref<32x16xbf16, #tpu.memory_space<vmem>>, vector<32x16xbf16>
    %c0_3 = arith.constant 0 : index
    %c0_4 = arith.constant 0 : index
    %2 = vector.load %arg4[%c0_3, %c0_4] : memref<16x32xbf16, #tpu.memory_space<vmem>>, vector<16x32xbf16>
    %c0_5 = arith.constant 0 : index
    %c0_6 = arith.constant 0 : index
    %3 = vector.load %arg5[%c0_5, %c0_6] : memref<128x128xbf16, #tpu.memory_space<vmem>>, vector<128x128xbf16>
    %c0_7 = arith.constant 0 : index
    %c0_8 = arith.constant 0 : index
    %4 = vector.load %arg0[%c0_7, %c0_8] : memref<16x32xf32, #tpu.memory_space<vmem>>, vector<16x32xf32>
    %c0_9 = arith.constant 0 : index
    %c0_10 = arith.constant 0 : index
    %5 = vector.load %arg1[%c0_9, %c0_10] : memref<32x32xf32, #tpu.memory_space<vmem>>, vector<32x32xf32>
    %c0_11 = arith.constant 0 : index
    %c0_12 = arith.constant 0 : index
    %6 = vector.load %arg8[%c0_11, %c0_12] : memref<32x384xbf16, #tpu.memory_space<vmem>>, vector<32x384xbf16>
    %c0_13 = arith.constant 0 : index
    %c0_14 = arith.constant 0 : index
    %7 = vector.load %arg9[%c0_13, %c0_14] : memref<1x384xf32, #tpu.memory_space<vmem>>, vector<1x384xf32>
    %c0_15 = arith.constant 0 : index
    %c0_16 = arith.constant 0 : index
    %8 = vector.load %arg10[%c0_15, %c0_16] : memref<32x128xbf16, #tpu.memory_space<vmem>>, vector<32x128xbf16>
    %c0_17 = arith.constant 0 : index
    %c0_18 = arith.constant 0 : index
    %9 = vector.load %arg11[%c0_17, %c0_18] : memref<1x128xf32, #tpu.memory_space<vmem>>, vector<1x128xf32>
    %c0_19 = arith.constant 0 : index
    %c0_20 = arith.constant 0 : index
    %10 = vector.load %arg12[%c0_19, %c0_20] : memref<1x128xf32, #tpu.memory_space<vmem>>, vector<1x128xf32>
    %11 = arith.truncf %4 : vector<16x32xf32> to vector<16x32xbf16>
    %cst = arith.constant dense<0.000000e+00> : vector<16x384xf32>
    %12 = tpu.matmul %11, %6, %cst {dimension_numbers = #tpu.dot_dimension_numbers<[1], [0], [0], [1], [0, 0, 1, 1], [], []>} : vector<16x32xbf16>, vector<32x384xbf16>, vector<16x384xf32> -> vector<16x384xf32>
    %13 = vector.broadcast %7 : vector<1x384xf32> to vector<16x384xf32>
    %14 = arith.addf %12, %13 : vector<16x384xf32>
    %15 = vector.extract_strided_slice %14 {offsets = [0, 0], sizes = [16, 128], strides = [1, 1]} : vector<16x384xf32> to vector<16x128xf32>
    %16 = vector.extract_strided_slice %14 {offsets = [0, 128], sizes = [16, 128], strides = [1, 1]} : vector<16x384xf32> to vector<16x128xf32>
    %17 = vector.extract_strided_slice %14 {offsets = [0, 256], sizes = [16, 128], strides = [1, 1]} : vector<16x384xf32> to vector<16x128xf32>
    %18 = arith.truncf %5 : vector<32x32xf32> to vector<32x32xbf16>
    %cst_21 = arith.constant dense<0.000000e+00> : vector<32x128xf32>
    %19 = tpu.matmul %18, %8, %cst_21 {dimension_numbers = #tpu.dot_dimension_numbers<[1], [0], [0], [1], [0, 0, 1, 1], [], []>} : vector<32x32xbf16>, vector<32x128xbf16>, vector<32x128xf32> -> vector<32x128xf32>
    %20 = vector.broadcast %9 : vector<1x128xf32> to vector<32x128xf32>
    %21 = arith.addf %19, %20 : vector<32x128xf32>
    %22 = arith.truncf %15 : vector<16x128xf32> to vector<16x128xbf16>
    %cst_22 = arith.constant dense<0.000000e+00> : vector<32x128xf32>
    %23 = tpu.matmul %0, %22, %cst_22 {dimension_numbers = #tpu.dot_dimension_numbers<[1], [0], [0], [1], [0, 0, 1, 1], [], []>} : vector<32x16xbf16>, vector<16x128xbf16>, vector<32x128xf32> -> vector<32x128xf32>
    %24 = arith.truncf %16 : vector<16x128xf32> to vector<16x128xbf16>
    %cst_23 = arith.constant dense<0.000000e+00> : vector<32x128xf32>
    %25 = tpu.matmul %1, %24, %cst_23 {dimension_numbers = #tpu.dot_dimension_numbers<[1], [0], [0], [1], [0, 0, 1, 1], [], []>} : vector<32x16xbf16>, vector<16x128xbf16>, vector<32x128xf32> -> vector<32x128xf32>
    %26 = arith.addf %23, %25 : vector<32x128xf32>
    %27 = arith.addf %26, %21 : vector<32x128xf32>
    %cst_24 = arith.constant 0.000000e+00 : f32
    %28 = vector.broadcast %cst_24 : f32 to vector<32x128xf32>
    %29 = arith.cmpf ogt, %27, %28 : vector<32x128xf32>
    %cst_25 = arith.constant 0.00999999977 : f32
    %30 = vector.broadcast %cst_25 : f32 to vector<32x128xf32>
    %31 = arith.mulf %30, %27 : vector<32x128xf32>
    %32 = arith.select %29, %27, %31 : vector<32x128xi1>, vector<32x128xf32>
    %33 = vector.broadcast %10 : vector<1x128xf32> to vector<32x128xf32>
    %34 = arith.mulf %32, %33 : vector<32x128xf32>
    %35 = arith.truncf %34 : vector<32x128xf32> to vector<32x128xbf16>
    %cst_26 = arith.constant dense<0.000000e+00> : vector<32x128xf32>
    %36 = tpu.matmul %35, %3, %cst_26 {dimension_numbers = #tpu.dot_dimension_numbers<[1], [0], [0], [1], [0, 0, 1, 1], [], []>} : vector<32x128xbf16>, vector<128x128xbf16>, vector<32x128xf32> -> vector<32x128xf32>
    %37 = vector.shape_cast %36 : vector<32x128xf32> to vector<1x32x128xf32>
    %cst_27 = arith.constant dense<0xFF800000> : vector<1xf32>
    %38 = vector.multi_reduction <maximumf>, %37, %cst_27 [1, 2] : vector<1x32x128xf32> to vector<1xf32>
    %39 = vector.shape_cast %38 : vector<1xf32> to vector<1x1x1xf32>
    %40 = vector.extract %39[0, 0, 0] : f32 from vector<1x1x1xf32>
    %41 = vector.broadcast %40 : f32 to vector<1x1xf32>
    %42 = vector.broadcast %41 : vector<1x1xf32> to vector<32x128xf32>
    %43 = arith.subf %36, %42 : vector<32x128xf32>
    %44 = math.exp %43 : vector<32x128xf32>
    %45 = arith.truncf %44 : vector<32x128xf32> to vector<32x128xbf16>
    %cst_28 = arith.constant dense<0.000000e+00> : vector<16x128xf32>
    %46 = tpu.matmul %2, %45, %cst_28 {dimension_numbers = #tpu.dot_dimension_numbers<[1], [0], [0], [1], [0, 0, 1, 1], [], []>} : vector<16x32xbf16>, vector<32x128xbf16>, vector<16x128xf32> -> vector<16x128xf32>
    %47 = arith.truncf %46 : vector<16x128xf32> to vector<16x128xbf16>
    %cst_29 = arith.constant dense<0.000000e+00> : vector<32x128xf32>
    %48 = tpu.matmul %1, %47, %cst_29 {dimension_numbers = #tpu.dot_dimension_numbers<[1], [0], [0], [1], [0, 0, 1, 1], [], []>} : vector<32x16xbf16>, vector<16x128xbf16>, vector<32x128xf32> -> vector<32x128xf32>
    %49 = tpu.reciprocal %48 {approx = true} : vector<32x128xf32> -> vector<32x128xf32>
    %50 = arith.mulf %44, %49 : vector<32x128xf32>
    %51 = arith.truncf %17 : vector<16x128xf32> to vector<16x128xbf16>
    %cst_30 = arith.constant dense<0.000000e+00> : vector<32x128xf32>
    %52 = tpu.matmul %0, %51, %cst_30 {dimension_numbers = #tpu.dot_dimension_numbers<[1], [0], [0], [1], [0, 0, 1, 1], [], []>} : vector<32x16xbf16>, vector<16x128xbf16>, vector<32x128xf32> -> vector<32x128xf32>
    %53 = arith.mulf %52, %50 : vector<32x128xf32>
    %54 = arith.truncf %53 : vector<32x128xf32> to vector<32x128xbf16>
    %cst_31 = arith.constant dense<0.000000e+00> : vector<16x128xf32>
    %55 = tpu.matmul %2, %54, %cst_31 {dimension_numbers = #tpu.dot_dimension_numbers<[1], [0], [0], [1], [0, 0, 1, 1], [], []>} : vector<16x32xbf16>, vector<32x128xbf16>, vector<16x128xf32> -> vector<16x128xf32>
    %c0_32 = arith.constant 0 : index
    %c0_33 = arith.constant 0 : index
    %56 = vector.load %arg13[%c0_32, %c0_33] : memref<128x384xbf16, #tpu.memory_space<vmem>>, vector<128x384xbf16>
    %c0_34 = arith.constant 0 : index
    %c0_35 = arith.constant 0 : index
    %57 = vector.load %arg14[%c0_34, %c0_35] : memref<1x384xf32, #tpu.memory_space<vmem>>, vector<1x384xf32>
    %c0_36 = arith.constant 0 : index
    %c0_37 = arith.constant 0 : index
    %58 = vector.load %arg15[%c0_36, %c0_37] : memref<128x128xbf16, #tpu.memory_space<vmem>>, vector<128x128xbf16>
    %c0_38 = arith.constant 0 : index
    %c0_39 = arith.constant 0 : index
    %59 = vector.load %arg16[%c0_38, %c0_39] : memref<1x128xf32, #tpu.memory_space<vmem>>, vector<1x128xf32>
    %c0_40 = arith.constant 0 : index
    %c0_41 = arith.constant 0 : index
    %60 = vector.load %arg17[%c0_40, %c0_41] : memref<1x128xf32, #tpu.memory_space<vmem>>, vector<1x128xf32>
    %61 = arith.truncf %55 : vector<16x128xf32> to vector<16x128xbf16>
    %cst_42 = arith.constant dense<0.000000e+00> : vector<16x384xf32>
    %62 = tpu.matmul %61, %56, %cst_42 {dimension_numbers = #tpu.dot_dimension_numbers<[1], [0], [0], [1], [0, 0, 1, 1], [], []>} : vector<16x128xbf16>, vector<128x384xbf16>, vector<16x384xf32> -> vector<16x384xf32>
    %63 = vector.broadcast %57 : vector<1x384xf32> to vector<16x384xf32>
    %64 = arith.addf %62, %63 : vector<16x384xf32>
    %65 = vector.extract_strided_slice %64 {offsets = [0, 0], sizes = [16, 128], strides = [1, 1]} : vector<16x384xf32> to vector<16x128xf32>
    %66 = vector.extract_strided_slice %64 {offsets = [0, 128], sizes = [16, 128], strides = [1, 1]} : vector<16x384xf32> to vector<16x128xf32>
    %67 = vector.extract_strided_slice %64 {offsets = [0, 256], sizes = [16, 128], strides = [1, 1]} : vector<16x384xf32> to vector<16x128xf32>
    %68 = arith.truncf %32 : vector<32x128xf32> to vector<32x128xbf16>
    %cst_43 = arith.constant dense<0.000000e+00> : vector<32x128xf32>
    %69 = tpu.matmul %68, %58, %cst_43 {dimension_numbers = #tpu.dot_dimension_numbers<[1], [0], [0], [1], [0, 0, 1, 1], [], []>} : vector<32x128xbf16>, vector<128x128xbf16>, vector<32x128xf32> -> vector<32x128xf32>
    %70 = vector.broadcast %59 : vector<1x128xf32> to vector<32x128xf32>
    %71 = arith.addf %69, %70 : vector<32x128xf32>
    %72 = arith.truncf %65 : vector<16x128xf32> to vector<16x128xbf16>
    %cst_44 = arith.constant dense<0.000000e+00> : vector<32x128xf32>
    %73 = tpu.matmul %0, %72, %cst_44 {dimension_numbers = #tpu.dot_dimension_numbers<[1], [0], [0], [1], [0, 0, 1, 1], [], []>} : vector<32x16xbf16>, vector<16x128xbf16>, vector<32x128xf32> -> vector<32x128xf32>
    %74 = arith.truncf %66 : vector<16x128xf32> to vector<16x128xbf16>
    %cst_45 = arith.constant dense<0.000000e+00> : vector<32x128xf32>
    %75 = tpu.matmul %1, %74, %cst_45 {dimension_numbers = #tpu.dot_dimension_numbers<[1], [0], [0], [1], [0, 0, 1, 1], [], []>} : vector<32x16xbf16>, vector<16x128xbf16>, vector<32x128xf32> -> vector<32x128xf32>
    %76 = arith.addf %73, %75 : vector<32x128xf32>
    %77 = arith.addf %76, %71 : vector<32x128xf32>
    %cst_46 = arith.constant 0.000000e+00 : f32
    %78 = vector.broadcast %cst_46 : f32 to vector<32x128xf32>
    %79 = arith.cmpf ogt, %77, %78 : vector<32x128xf32>
    %cst_47 = arith.constant 0.00999999977 : f32
    %80 = vector.broadcast %cst_47 : f32 to vector<32x128xf32>
    %81 = arith.mulf %80, %77 : vector<32x128xf32>
    %82 = arith.select %79, %77, %81 : vector<32x128xi1>, vector<32x128xf32>
    %83 = vector.broadcast %60 : vector<1x128xf32> to vector<32x128xf32>
    %84 = arith.mulf %82, %83 : vector<32x128xf32>
    %85 = arith.truncf %84 : vector<32x128xf32> to vector<32x128xbf16>
    %cst_48 = arith.constant dense<0.000000e+00> : vector<32x128xf32>
    %86 = tpu.matmul %85, %3, %cst_48 {dimension_numbers = #tpu.dot_dimension_numbers<[1], [0], [0], [1], [0, 0, 1, 1], [], []>} : vector<32x128xbf16>, vector<128x128xbf16>, vector<32x128xf32> -> vector<32x128xf32>
    %87 = vector.shape_cast %86 : vector<32x128xf32> to vector<1x32x128xf32>
    %cst_49 = arith.constant dense<0xFF800000> : vector<1xf32>
    %88 = vector.multi_reduction <maximumf>, %87, %cst_49 [1, 2] : vector<1x32x128xf32> to vector<1xf32>
    %89 = vector.shape_cast %88 : vector<1xf32> to vector<1x1x1xf32>
    %90 = vector.extract %89[0, 0, 0] : f32 from vector<1x1x1xf32>
    %91 = vector.broadcast %90 : f32 to vector<1x1xf32>
    %92 = vector.broadcast %91 : vector<1x1xf32> to vector<32x128xf32>
    %93 = arith.subf %86, %92 : vector<32x128xf32>
    %94 = math.exp %93 : vector<32x128xf32>
    %95 = arith.truncf %94 : vector<32x128xf32> to vector<32x128xbf16>
    %cst_50 = arith.constant dense<0.000000e+00> : vector<16x128xf32>
    %96 = tpu.matmul %2, %95, %cst_50 {dimension_numbers = #tpu.dot_dimension_numbers<[1], [0], [0], [1], [0, 0, 1, 1], [], []>} : vector<16x32xbf16>, vector<32x128xbf16>, vector<16x128xf32> -> vector<16x128xf32>
    %97 = arith.truncf %96 : vector<16x128xf32> to vector<16x128xbf16>
    %cst_51 = arith.constant dense<0.000000e+00> : vector<32x128xf32>
    %98 = tpu.matmul %1, %97, %cst_51 {dimension_numbers = #tpu.dot_dimension_numbers<[1], [0], [0], [1], [0, 0, 1, 1], [], []>} : vector<32x16xbf16>, vector<16x128xbf16>, vector<32x128xf32> -> vector<32x128xf32>
    %99 = tpu.reciprocal %98 {approx = true} : vector<32x128xf32> -> vector<32x128xf32>
    %100 = arith.mulf %94, %99 : vector<32x128xf32>
    %101 = arith.truncf %67 : vector<16x128xf32> to vector<16x128xbf16>
    %cst_52 = arith.constant dense<0.000000e+00> : vector<32x128xf32>
    %102 = tpu.matmul %0, %101, %cst_52 {dimension_numbers = #tpu.dot_dimension_numbers<[1], [0], [0], [1], [0, 0, 1, 1], [], []>} : vector<32x16xbf16>, vector<16x128xbf16>, vector<32x128xf32> -> vector<32x128xf32>
    %103 = arith.mulf %102, %100 : vector<32x128xf32>
    %104 = arith.truncf %103 : vector<32x128xf32> to vector<32x128xbf16>
    %cst_53 = arith.constant dense<0.000000e+00> : vector<16x128xf32>
    %105 = tpu.matmul %2, %104, %cst_53 {dimension_numbers = #tpu.dot_dimension_numbers<[1], [0], [0], [1], [0, 0, 1, 1], [], []>} : vector<16x32xbf16>, vector<32x128xbf16>, vector<16x128xf32> -> vector<16x128xf32>
    %106 = arith.truncf %105 : vector<16x128xf32> to vector<16x128xbf16>
    %c0_54 = arith.constant 0 : index
    %c0_55 = arith.constant 0 : index
    %107 = vector.load %arg18[%c0_54, %c0_55] : memref<128x128xbf16, #tpu.memory_space<vmem>>, vector<128x128xbf16>
    %cst_56 = arith.constant dense<0.000000e+00> : vector<16x128xf32>
    %108 = tpu.matmul %106, %107, %cst_56 {dimension_numbers = #tpu.dot_dimension_numbers<[1], [0], [0], [1], [0, 0, 1, 1], [], []>} : vector<16x128xbf16>, vector<128x128xbf16>, vector<16x128xf32> -> vector<16x128xf32>
    %c0_57 = arith.constant 0 : index
    %c0_58 = arith.constant 0 : index
    %109 = vector.load %arg19[%c0_57, %c0_58] : memref<1x128xf32, #tpu.memory_space<vmem>>, vector<1x128xf32>
    %110 = vector.broadcast %109 : vector<1x128xf32> to vector<16x128xf32>
    %111 = arith.addf %108, %110 : vector<16x128xf32>
    %112 = arith.truncf %82 : vector<32x128xf32> to vector<32x128xbf16>
    %c0_59 = arith.constant 0 : index
    %c0_60 = arith.constant 0 : index
    %113 = vector.load %arg20[%c0_59, %c0_60] : memref<128x128xbf16, #tpu.memory_space<vmem>>, vector<128x128xbf16>
    %cst_61 = arith.constant dense<0.000000e+00> : vector<32x128xf32>
    %114 = tpu.matmul %112, %113, %cst_61 {dimension_numbers = #tpu.dot_dimension_numbers<[1], [0], [0], [1], [0, 0, 1, 1], [], []>} : vector<32x128xbf16>, vector<128x128xbf16>, vector<32x128xf32> -> vector<32x128xf32>
    %c0_62 = arith.constant 0 : index
    %c0_63 = arith.constant 0 : index
    %115 = vector.load %arg21[%c0_62, %c0_63] : memref<1x128xf32, #tpu.memory_space<vmem>>, vector<1x128xf32>
    %116 = vector.broadcast %115 : vector<1x128xf32> to vector<32x128xf32>
    %117 = arith.addf %114, %116 : vector<32x128xf32>
    %c0_64 = arith.constant 0 : index
    %c0_65 = arith.constant 0 : index
    %118 = vector.load %arg6[%c0_64, %c0_65] : memref<2x16xbf16, #tpu.memory_space<vmem>>, vector<2x16xbf16>
    %119 = arith.truncf %111 : vector<16x128xf32> to vector<16x128xbf16>
    %cst_66 = arith.constant dense<0.000000e+00> : vector<2x128xf32>
    %120 = tpu.matmul %118, %119, %cst_66 {dimension_numbers = #tpu.dot_dimension_numbers<[1], [0], [0], [1], [0, 0, 1, 1], [], []>} : vector<2x16xbf16>, vector<16x128xbf16>, vector<2x128xf32> -> vector<2x128xf32>
    %c0_67 = arith.constant 0 : index
    %c0_68 = arith.constant 0 : index
    %121 = vector.load %arg7[%c0_67, %c0_68] : memref<2x32xbf16, #tpu.memory_space<vmem>>, vector<2x32xbf16>
    %122 = arith.truncf %117 : vector<32x128xf32> to vector<32x128xbf16>
    %cst_69 = arith.constant dense<0.000000e+00> : vector<2x128xf32>
    %123 = tpu.matmul %121, %122, %cst_69 {dimension_numbers = #tpu.dot_dimension_numbers<[1], [0], [0], [1], [0, 0, 1, 1], [], []>} : vector<2x32xbf16>, vector<32x128xbf16>, vector<2x128xf32> -> vector<2x128xf32>
    %124 = arith.truncf %120 : vector<2x128xf32> to vector<2x128xbf16>
    %c0_70 = arith.constant 0 : index
    %c0_71 = arith.constant 0 : index
    %125 = vector.load %arg22[%c0_70, %c0_71] : memref<128x128xbf16, #tpu.memory_space<vmem>>, vector<128x128xbf16>
    %cst_72 = arith.constant dense<0.000000e+00> : vector<2x128xf32>
    %126 = tpu.matmul %124, %125, %cst_72 {dimension_numbers = #tpu.dot_dimension_numbers<[1], [0], [0], [1], [0, 0, 1, 1], [], []>} : vector<2x128xbf16>, vector<128x128xbf16>, vector<2x128xf32> -> vector<2x128xf32>
    %127 = arith.truncf %123 : vector<2x128xf32> to vector<2x128xbf16>
    %c0_73 = arith.constant 0 : index
    %c0_74 = arith.constant 0 : index
    %128 = vector.load %arg23[%c0_73, %c0_74] : memref<128x128xbf16, #tpu.memory_space<vmem>>, vector<128x128xbf16>
    %cst_75 = arith.constant dense<0.000000e+00> : vector<2x128xf32>
    %129 = tpu.matmul %127, %128, %cst_75 {dimension_numbers = #tpu.dot_dimension_numbers<[1], [0], [0], [1], [0, 0, 1, 1], [], []>} : vector<2x128xbf16>, vector<128x128xbf16>, vector<2x128xf32> -> vector<2x128xf32>
    %130 = arith.addf %126, %129 : vector<2x128xf32>
    %c0_76 = arith.constant 0 : index
    %c0_77 = arith.constant 0 : index
    %131 = vector.load %arg24[%c0_76, %c0_77] : memref<1x128xf32, #tpu.memory_space<vmem>>, vector<1x128xf32>
    %132 = vector.broadcast %131 : vector<1x128xf32> to vector<2x128xf32>
    %133 = arith.addf %130, %132 : vector<2x128xf32>
    %cst_78 = arith.constant 0.000000e+00 : f32
    %134 = vector.broadcast %cst_78 : f32 to vector<2x128xf32>
    %135 = arith.maximumf %133, %134 : vector<2x128xf32>
    %136 = arith.truncf %135 : vector<2x128xf32> to vector<2x128xbf16>
    %c0_79 = arith.constant 0 : index
    %c0_80 = arith.constant 0 : index
    %137 = vector.load %arg25[%c0_79, %c0_80] : memref<128x128xbf16, #tpu.memory_space<vmem>>, vector<128x128xbf16>
    %cst_81 = arith.constant dense<0.000000e+00> : vector<2x128xf32>
    %138 = tpu.matmul %136, %137, %cst_81 {dimension_numbers = #tpu.dot_dimension_numbers<[1], [0], [0], [1], [0, 0, 1, 1], [], []>} : vector<2x128xbf16>, vector<128x128xbf16>, vector<2x128xf32> -> vector<2x128xf32>
    %c0_82 = arith.constant 0 : index
    %c0_83 = arith.constant 0 : index
    %139 = vector.load %arg26[%c0_82, %c0_83] : memref<1x128xf32, #tpu.memory_space<vmem>>, vector<1x128xf32>
    %140 = vector.broadcast %139 : vector<1x128xf32> to vector<2x128xf32>
    %141 = arith.addf %138, %140 : vector<2x128xf32>
    %cst_84 = arith.constant 0.000000e+00 : f32
    %142 = vector.broadcast %cst_84 : f32 to vector<2x128xf32>
    %143 = arith.maximumf %141, %142 : vector<2x128xf32>
    %144 = arith.truncf %143 : vector<2x128xf32> to vector<2x128xbf16>
    %c0_85 = arith.constant 0 : index
    %c0_86 = arith.constant 0 : index
    %145 = vector.load %arg27[%c0_85, %c0_86] : memref<128x1xbf16, #tpu.memory_space<vmem>>, vector<128x1xbf16>
    %cst_87 = arith.constant dense<0.000000e+00> : vector<2x1xf32>
    %146 = tpu.matmul %144, %145, %cst_87 {dimension_numbers = #tpu.dot_dimension_numbers<[1], [0], [0], [1], [0, 0, 1, 1], [], []>} : vector<2x128xbf16>, vector<128x1xbf16>, vector<2x1xf32> -> vector<2x1xf32>
    %c0_88 = arith.constant 0 : index
    %c0_89 = arith.constant 0 : index
    %147 = vector.load %arg28[%c0_88, %c0_89] : memref<1x1xf32, #tpu.memory_space<vmem>>, vector<1x1xf32>
    %148 = vector.broadcast %147 : vector<1x1xf32> to vector<2x1xf32>
    %149 = arith.addf %146, %148 : vector<2x1xf32>
    %c0_90 = arith.constant 0 : index
    %c0_91 = arith.constant 0 : index
    %150 = vector.load %arg29[%c0_90, %c0_91] : memref<2x1xf32, #tpu.memory_space<vmem>>, vector<2x1xf32>
    tpu.vector_store %arg29[%c0_90, %c0_91], %149 {strides = array<i32>} : memref<2x1xf32, #tpu.memory_space<vmem>>, vector<2x1xf32>,
    return
  }
}

</mosaic_0001>

<llo_original>
// kernel: _lambda_.1
$region0: #{_lambda_.1}
  #allocation0 [shape = 'u32[]', space=smem, size = 0x4, offset = 0x4, fixed_abs, tag = 'smem constant byte address 0x4 - core index']
  #allocation1 [shape = 'u32[144,128]{1,0:T(1,128)}', space=vmem, size = 0x12000, scoped, tag = 'internal scratch']
  #allocation2 [shape = 'f32[1,1]{1,0:T(1,128)S(1)}', space=vmem, size = 0x200, scoped, tag = 'scoped memory for _lambda_.1']
  %s0 = inlined_call_operand.smem [shape: u32[30], index: -1, kind: input, shape index: {}]
  %s1 = sld [smem:[%s0]]
  %s2 = scalar_lea.smem %s0, 1
  %s3 = sld [smem:[%s2]]
  %s4 = scalar_lea.smem %s0, 2
  %s5 = sld [smem:[%s4]]
  %s6 = scalar_lea.smem %s0, 3
  %s7 = sld [smem:[%s6]]
  %s8 = scalar_lea.smem %s0, 4
  %s9 = sld [smem:[%s8]]
  %s10 = scalar_lea.smem %s0, 5
  %s11 = sld [smem:[%s10]]
  %s12 = scalar_lea.smem %s0, 6
  %s13 = sld [smem:[%s12]]
  %s14 = scalar_lea.smem %s0, 7
  %s15 = sld [smem:[%s14]]
  %s16 = scalar_lea.smem %s0, 8
  %s17 = sld [smem:[%s16]]
  %s18 = scalar_lea.smem %s0, 9
  %s19 = sld [smem:[%s18]]
  %s20 = scalar_lea.smem %s0, 10
  %s21 = sld [smem:[%s20]]
  %s22 = scalar_lea.smem %s0, 11
  %s23 = sld [smem:[%s22]]
  %s24 = scalar_lea.smem %s0, 12
  %s25 = sld [smem:[%s24]]
  %s26 = scalar_lea.smem %s0, 13
  %s27 = sld [smem:[%s26]]
  %s28 = scalar_lea.smem %s0, 14
  %s29 = sld [smem:[%s28]]
  %s30 = scalar_lea.smem %s0, 15
  %s31 = sld [smem:[%s30]]
  %s32 = scalar_lea.smem %s0, 16
  %s33 = sld [smem:[%s32]]
  %s34 = scalar_lea.smem %s0, 17
  %s35 = sld [smem:[%s34]]
  %s36 = scalar_lea.smem %s0, 18
  %s37 = sld [smem:[%s36]]
  %s38 = scalar_lea.smem %s0, 19
  %s39 = sld [smem:[%s38]]
  %s40 = scalar_lea.smem %s0, 20
  %s41 = sld [smem:[%s40]]
  %s42 = scalar_lea.smem %s0, 21
  %s43 = sld [smem:[%s42]]
  %s44 = scalar_lea.smem %s0, 22
  %s45 = sld [smem:[%s44]]
  %s46 = scalar_lea.smem %s0, 23
  %s47 = sld [smem:[%s46]]
  %s48 = scalar_lea.smem %s0, 24
  %s49 = sld [smem:[%s48]]
  %s50 = scalar_lea.smem %s0, 25
  %s51 = sld [smem:[%s50]]
  %s52 = scalar_lea.smem %s0, 26
  %s53 = sld [smem:[%s52]]
  %s54 = scalar_lea.smem %s0, 27
  %s55 = sld [smem:[%s54]]
  %s56 = scalar_lea.smem %s0, 28
  %s57 = sld [smem:[%s56]]
  %s58 = scalar_lea.smem %s0, 29
  %s59 = sld [smem:[%s58]]
  %s60 = sld [smem:[#allocation0]]
  $region214: #{_lambda_.1} parent=0
    _
  %s62 = ssub.s32 1, %s60
  %s63 = scalar_select 0, %s62, %s60
  %v64 = vstv %s57
  %65 = vst [vmem:[#allocation2] sm:$0x1] %v64
  $region1: #{_lambda_.1} parent=0
    #allocation3 [shape = 'u8[8192]{0}', space=vmem, size = 0x2000, scoped, tag = 'input window, operand 0, single buffered']
    #allocation4 [shape = 's32[1]{0}', space=sflag, size = 0x4, scoped, tag = 'scoped memory for _lambda_.1']
    #allocation5 [shape = 'u8[8192]{0}', space=vmem, size = 0x2000, scoped, tag = 'input window, operand 2, single buffered']
    #allocation6 [shape = 's32[1]{0}', space=sflag, size = 0x4, scoped, tag = 'scoped memory for _lambda_.1']
    #allocation7 [shape = 'u8[8192]{0}', space=vmem, size = 0x2000, scoped, tag = 'input window, operand 3, single buffered']
    #allocation8 [shape = 'u8[32768]{0}', space=vmem, size = 0x8000, scoped, tag = 'input window, operand 5, single buffered']
    #allocation9 [shape = 's32[1]{0}', space=sflag, size = 0x4, scoped, tag = 'scoped memory for _lambda_.1']
    #allocation10 [shape = 'u8[24576]{0}', space=vmem, size = 0x6000, scoped, tag = 'input window, operand 8, single buffered']
    #allocation11 [shape = 'u8[1536]{0}', space=vmem, size = 0x800, scoped, tag = 'input window, operand 9, single buffered']
    #allocation12 [shape = 's32[1]{0}', space=sflag, size = 0x4, scoped, tag = 'scoped memory for _lambda_.1']
    #allocation13 [shape = 'u8[8192]{0}', space=vmem, size = 0x2000, scoped, tag = 'input window, operand 10, single buffered']
    #allocation14 [shape = 'u8[512]{0}', space=vmem, size = 0x400, scoped, tag = 'input window, operand 11, single buffered']
    #allocation15 [shape = 's32[1]{0}', space=sflag, size = 0x4, scoped, tag = 'scoped memory for _lambda_.1']
    #allocation16 [shape = 'u8[512]{0}', space=vmem, size = 0x400, scoped, tag = 'input window, operand 12, single buffered']
    #allocation17 [shape = 'u8[98304]{0}', space=vmem, size = 0x18000, scoped, tag = 'input window, operand 13, single buffered']
    #allocation18 [shape = 's32[1]{0}', space=sflag, size = 0x4, scoped, tag = 'scoped memory for _lambda_.1']
    #allocation19 [shape = 'u8[1536]{0}', space=vmem, size = 0x800, scoped, tag = 'input window, operand 14, single buffered']
    #allocation20 [shape = 'u8[512]{0}', space=vmem, size = 0x400, scoped, tag = 'input window, operand 16, single buffered']
    #allocation21 [shape = 's32[1]{0}', space=sflag, size = 0x4, scoped, tag = 'scoped memory for _lambda_.1']
    #allocation22 [shape = 'u8[512]{0}', space=vmem, size = 0x400, scoped, tag = 'input window, operand 17, single buffered']
    #allocation23 [shape = 'u8[32768]{0}', space=vmem, size = 0x8000, scoped, tag = 'input window, operand 18, single buffered']
    #allocation24 [shape = 's32[1]{0}', space=sflag, size = 0x4, scoped, tag = 'scoped memory for _lambda_.1']
    #allocation25 [shape = 'u8[512]{0}', space=vmem, size = 0x400, scoped, tag = 'input window, operand 19, single buffered']
    #allocation26 [shape = 'u8[32768]{0}', space=vmem, size = 0x8000, scoped, tag = 'input window, operand 20, single buffered']
    #allocation27 [shape = 's32[1]{0}', space=sflag, size = 0x4, scoped, tag = 'scoped memory for _lambda_.1']
    #allocation28 [shape = 'u8[512]{0}', space=vmem, size = 0x400, scoped, tag = 'input window, operand 21, single buffered']
    #allocation29 [shape = 'u8[32768]{0}', space=vmem, size = 0x8000, scoped, tag = 'input window, operand 22, single buffered']
    #allocation30 [shape = 's32[1]{0}', space=sflag, size = 0x4, scoped, tag = 'scoped memory for _lambda_.1']
    #allocation31 [shape = 'u8[32768]{0}', space=vmem, size = 0x8000, scoped, tag = 'input window, operand 23, single buffered']
    #allocation32 [shape = 'u8[512]{0}', space=vmem, size = 0x400, scoped, tag = 'input window, operand 24, single buffered']
    #allocation33 [shape = 's32[1]{0}', space=sflag, size = 0x4, scoped, tag = 'scoped memory for _lambda_.1']
    #allocation34 [shape = 'u8[32768]{0}', space=vmem, size = 0x8000, scoped, tag = 'input window, operand 25, single buffered']
    #allocation35 [shape = 'u8[512]{0}', space=vmem, size = 0x400, scoped, tag = 'input window, operand 26, single buffered']
    #allocation36 [shape = 's32[1]{0}', space=sflag, size = 0x4, scoped, tag = 'scoped memory for _lambda_.1']
    %66 = vsyncpa [#allocation4], 0
    %67 = vsyncpa [#allocation6], 0
    %68 = vsyncpa [#allocation9], 0
    %69 = vsyncpa [#allocation12], 0
    %70 = vsyncpa [#allocation15], 0
    %71 = vsyncpa [#allocation18], 0
    %72 = vsyncpa [#allocation21], 0
    %73 = vsyncpa [#allocation24], 0
    %74 = vsyncpa [#allocation27], 0
    %75 = vsyncpa [#allocation30], 0
    %76 = vsyncpa [#allocation33], 0
    %77 = vsyncpa [#allocation36], 0
    // Predicated region
    $region2: #{_lambda_.1} parent=1 // pred_check
      _
    $region3: #{_lambda_.1} parent=1 // pred_check_branch
      %79 = sbr.rel (0) target = $region5
    $region4: #{_lambda_.1} parent=1 // pred_region
      %s81 = ssub.s32 256, 256
      %82 = vsyncadd [#allocation4], %s81
      %s83 = sshll.u32 [#allocation3], 4
      %s84 = int_to_ptr.vmem [resolvable:$true] %s83
      %89 = dma.hbm_to_vmem [thread:$0]  %s1, 256, %s84, [#allocation4], 128, 128, 8
    $region5: #{_lambda_.1} parent=1 // pred_fallthru
      _
    // Predicated region
    $region6: #{_lambda_.1} parent=1 // pred_check
      _
    $region7: #{_lambda_.1} parent=1 // pred_check_branch
      %91 = sbr.rel (0) target = $region9
    $region8: #{_lambda_.1} parent=1 // pred_region
      _
    $region9: #{_lambda_.1} parent=1 // pred_fallthru
      _
    // Predicated region
    $region10: #{_lambda_.1} parent=1 // pred_check
      _
    $region11: #{_lambda_.1} parent=1 // pred_check_branch
      %93 = sbr.rel (0) target = $region13
    $region12: #{_lambda_.1} parent=1 // pred_region
      %s95 = ssub.s32 256, 256
      %96 = vsyncadd [#allocation6], %s95
      %s97 = sshll.u32 [#allocation5], 4
      %s98 = int_to_ptr.vmem [resolvable:$true] %s97
      %103 = dma.hbm_to_vmem [thread:$0]  %s5, 256, %s98, [#allocation6], 64, 64, 4
    $region13: #{_lambda_.1} parent=1 // pred_fallthru
      _
    // Predicated region
    $region14: #{_lambda_.1} parent=1 // pred_check
      _
    $region15: #{_lambda_.1} parent=1 // pred_check_branch
      %105 = sbr.rel (0) target = $region17
    $region16: #{_lambda_.1} parent=1 // pred_region
      %s107 = ssub.s32 256, 256
      %108 = vsyncadd [#allocation6], %s107
      %s109 = sshll.u32 [#allocation7], 4
      %s110 = int_to_ptr.vmem [resolvable:$true] %s109
      %115 = dma.hbm_to_vmem [thread:$0]  %s7, 256, %s110, [#allocation6], 64, 64, 4
    $region17: #{_lambda_.1} parent=1 // pred_fallthru
      _
    // Predicated region
    $region18: #{_lambda_.1} parent=1 // pred_check
      _
    $region19: #{_lambda_.1} parent=1 // pred_check_branch
      %117 = sbr.rel (0) target = $region21
    $region20: #{_lambda_.1} parent=1 // pred_region
      _
    $region21: #{_lambda_.1} parent=1 // pred_fallthru
      _
    // Predicated region
    $region22: #{_lambda_.1} parent=1 // pred_check
      _
    $region23: #{_lambda_.1} parent=1 // pred_check_branch
      %119 = sbr.rel (0) target = $region25
    $region24: #{_lambda_.1} parent=1 // pred_region
      %s121 = ssub.s32 1024, 1024
      %122 = vsyncadd [#allocation9], %s121
      %s123 = sshll.u32 [#allocation8], 4
      %s124 = int_to_ptr.vmem [resolvable:$true] %s123
      %129 = dma.hbm_to_vmem [thread:$0]  %s11, 1024, %s124, [#allocation9], 64, 64, 4
    $region25: #{_lambda_.1} parent=1 // pred_fallthru
      _
    // Predicated region
    $region26: #{_lambda_.1} parent=1 // pred_check
      _
    $region27: #{_lambda_.1} parent=1 // pred_check_branch
      %131 = sbr.rel (0) target = $region29
    $region28: #{_lambda_.1} parent=1 // pred_region
      _
    $region29: #{_lambda_.1} parent=1 // pred_fallthru
      _
    // Predicated region
    $region30: #{_lambda_.1} parent=1 // pred_check
      _
    $region31: #{_lambda_.1} parent=1 // pred_check_branch
      %133 = sbr.rel (0) target = $region33
    $region32: #{_lambda_.1} parent=1 // pred_region
      _
    $region33: #{_lambda_.1} parent=1 // pred_fallthru
      _
    // Predicated region
    $region34: #{_lambda_.1} parent=1 // pred_check
      _
    $region35: #{_lambda_.1} parent=1 // pred_check_branch
      %135 = sbr.rel (0) target = $region37
    $region36: #{_lambda_.1} parent=1 // pred_region
      %s137 = ssub.s32 768, 768
      %138 = vsyncadd [#allocation9], %s137
      %s139 = sshll.u32 [#allocation10], 4
      %s140 = int_to_ptr.vmem [resolvable:$true] %s139
      %145 = dma.hbm_to_vmem [thread:$0]  %s17, 768, %s140, [#allocation9], 192, 192, 12
    $region37: #{_lambda_.1} parent=1 // pred_fallthru
      _
    // Predicated region
    $region38: #{_lambda_.1} parent=1 // pred_check
      _
    $region39: #{_lambda_.1} parent=1 // pred_check_branch
      %147 = sbr.rel (0) target = $region41
    $region40: #{_lambda_.1} parent=1 // pred_region
      %s149 = ssub.s32 48, 48
      %150 = vsyncadd [#allocation12], %s149
      %s152 = sshll.u32 [#allocation11], 4
      %s153 = int_to_ptr.vmem [resolvable:$true] %s152
      %155 = dma.hbm_to_vmem [thread:$0]  %s19, 48, %s153, [#allocation12]
    $region41: #{_lambda_.1} parent=1 // pred_fallthru
      _
    // Predicated region
    $region42: #{_lambda_.1} parent=1 // pred_check
      _
    $region43: #{_lambda_.1} parent=1 // pred_check_branch
      %157 = sbr.rel (0) target = $region45
    $region44: #{_lambda_.1} parent=1 // pred_region
      %s159 = ssub.s32 256, 256
      %160 = vsyncadd [#allocation12], %s159
      %s161 = sshll.u32 [#allocation13], 4
      %s162 = int_to_ptr.vmem [resolvable:$true] %s161
      %167 = dma.hbm_to_vmem [thread:$0]  %s21, 256, %s162, [#allocation12], 64, 64, 4
    $region45: #{_lambda_.1} parent=1 // pred_fallthru
      _
    // Predicated region
    $region46: #{_lambda_.1} parent=1 // pred_check
      _
    $region47: #{_lambda_.1} parent=1 // pred_check_branch
      %169 = sbr.rel (0) target = $region49
    $region48: #{_lambda_.1} parent=1 // pred_region
      %s171 = ssub.s32 16, 16
      %172 = vsyncadd [#allocation15], %s171
      %s174 = sshll.u32 [#allocation14], 4
      %s175 = int_to_ptr.vmem [resolvable:$true] %s174
      %177 = dma.hbm_to_vmem [thread:$0]  %s23, 16, %s175, [#allocation15]
    $region49: #{_lambda_.1} parent=1 // pred_fallthru
      _
    // Predicated region
    $region50: #{_lambda_.1} parent=1 // pred_check
      _
    $region51: #{_lambda_.1} parent=1 // pred_check_branch
      %179 = sbr.rel (0) target = $region53
    $region52: #{_lambda_.1} parent=1 // pred_region
      %s181 = ssub.s32 16, 16
      %182 = vsyncadd [#allocation15], %s181
      %s184 = sshll.u32 [#allocation16], 4
      %s185 = int_to_ptr.vmem [resolvable:$true] %s184
      %187 = dma.hbm_to_vmem [thread:$0]  %s25, 16, %s185, [#allocation15]
    $region53: #{_lambda_.1} parent=1 // pred_fallthru
      _
    // Predicated region
    $region54: #{_lambda_.1} parent=1 // pred_check
      _
    $region55: #{_lambda_.1} parent=1 // pred_check_branch
      %189 = sbr.rel (0) target = $region57
    $region56: #{_lambda_.1} parent=1 // pred_region
      %s191 = ssub.s32 3072, 3072
      %192 = vsyncadd [#allocation18], %s191
      %s193 = sshll.u32 [#allocation17], 4
      %s194 = int_to_ptr.vmem [resolvable:$true] %s193
      %199 = dma.hbm_to_vmem [thread:$0]  %s27, 3072, %s194, [#allocation18], 192, 192, 12
    $region57: #{_lambda_.1} parent=1 // pred_fallthru
      _
    // Predicated region
    $region58: #{_lambda_.1} parent=1 // pred_check
      _
    $region59: #{_lambda_.1} parent=1 // pred_check_branch
      %201 = sbr.rel (0) target = $region61
    $region60: #{_lambda_.1} parent=1 // pred_region
      %s203 = ssub.s32 48, 48
      %204 = vsyncadd [#allocation18], %s203
      %s206 = sshll.u32 [#allocation19], 4
      %s207 = int_to_ptr.vmem [resolvable:$true] %s206
      %209 = dma.hbm_to_vmem [thread:$0]  %s29, 48, %s207, [#allocation18]
    $region61: #{_lambda_.1} parent=1 // pred_fallthru
      _
    // Predicated region
    $region62: #{_lambda_.1} parent=1 // pred_check
      _
    $region63: #{_lambda_.1} parent=1 // pred_check_branch
      %211 = sbr.rel (0) target = $region65
    $region64: #{_lambda_.1} parent=1 // pred_region
      _
    $region65: #{_lambda_.1} parent=1 // pred_fallthru
      _
    // Predicated region
    $region66: #{_lambda_.1} parent=1 // pred_check
      _
    $region67: #{_lambda_.1} parent=1 // pred_check_branch
      %213 = sbr.rel (0) target = $region69
    $region68: #{_lambda_.1} parent=1 // pred_region
      %s215 = ssub.s32 16, 16
      %216 = vsyncadd [#allocation21], %s215
      %s218 = sshll.u32 [#allocation20], 4
      %s219 = int_to_ptr.vmem [resolvable:$true] %s218
      %221 = dma.hbm_to_vmem [thread:$0]  %s33, 16, %s219, [#allocation21]
    $region69: #{_lambda_.1} parent=1 // pred_fallthru
      _
    // Predicated region
    $region70: #{_lambda_.1} parent=1 // pred_check
      _
    $region71: #{_lambda_.1} parent=1 // pred_check_branch
      %223 = sbr.rel (0) target = $region73
    $region72: #{_lambda_.1} parent=1 // pred_region
      %s225 = ssub.s32 16, 16
      %226 = vsyncadd [#allocation21], %s225
      %s228 = sshll.u32 [#allocation22], 4
      %s229 = int_to_ptr.vmem [resolvable:$true] %s228
      %231 = dma.hbm_to_vmem [thread:$0]  %s35, 16, %s229, [#allocation21]
    $region73: #{_lambda_.1} parent=1 // pred_fallthru
      _
    // Predicated region
    $region74: #{_lambda_.1} parent=1 // pred_check
      _
    $region75: #{_lambda_.1} parent=1 // pred_check_branch
      %233 = sbr.rel (0) target = $region77
    $region76: #{_lambda_.1} parent=1 // pred_region
      %s235 = ssub.s32 1024, 1024
      %236 = vsyncadd [#allocation24], %s235
      %s237 = sshll.u32 [#allocation23], 4
      %s238 = int_to_ptr.vmem [resolvable:$true] %s237
      %243 = dma.hbm_to_vmem [thread:$0]  %s37, 1024, %s238, [#allocation24], 64, 64, 4
    $region77: #{_lambda_.1} parent=1 // pred_fallthru
      _
    // Predicated region
    $region78: #{_lambda_.1} parent=1 // pred_check
      _
    $region79: #{_lambda_.1} parent=1 // pred_check_branch
      %245 = sbr.rel (0) target = $region81
    $region80: #{_lambda_.1} parent=1 // pred_region
      %s247 = ssub.s32 16, 16
      %248 = vsyncadd [#allocation24], %s247
      %s250 = sshll.u32 [#allocation25], 4
      %s251 = int_to_ptr.vmem [resolvable:$true] %s250
      %253 = dma.hbm_to_vmem [thread:$0]  %s39, 16, %s251, [#allocation24]
    $region81: #{_lambda_.1} parent=1 // pred_fallthru
      _
    // Predicated region
    $region82: #{_lambda_.1} parent=1 // pred_check
      _
    $region83: #{_lambda_.1} parent=1 // pred_check_branch
      %255 = sbr.rel (0) target = $region85
    $region84: #{_lambda_.1} parent=1 // pred_region
      %s257 = ssub.s32 1024, 1024
      %258 = vsyncadd [#allocation27], %s257
      %s259 = sshll.u32 [#allocation26], 4
      %s260 = int_to_ptr.vmem [resolvable:$true] %s259
      %265 = dma.hbm_to_vmem [thread:$0]  %s41, 1024, %s260, [#allocation27], 64, 64, 4
    $region85: #{_lambda_.1} parent=1 // pred_fallthru
      _
    // Predicated region
    $region86: #{_lambda_.1} parent=1 // pred_check
      _
    $region87: #{_lambda_.1} parent=1 // pred_check_branch
      %267 = sbr.rel (0) target = $region89
    $region88: #{_lambda_.1} parent=1 // pred_region
      %s269 = ssub.s32 16, 16
      %270 = vsyncadd [#allocation27], %s269
      %s272 = sshll.u32 [#allocation28], 4
      %s273 = int_to_ptr.vmem [resolvable:$true] %s272
      %275 = dma.hbm_to_vmem [thread:$0]  %s43, 16, %s273, [#allocation27]
    $region89: #{_lambda_.1} parent=1 // pred_fallthru
      _
    // Predicated region
    $region90: #{_lambda_.1} parent=1 // pred_check
      _
    $region91: #{_lambda_.1} parent=1 // pred_check_branch
      %277 = sbr.rel (0) target = $region93
    $region92: #{_lambda_.1} parent=1 // pred_region
      %s279 = ssub.s32 1024, 1024
      %280 = vsyncadd [#allocation30], %s279
      %s281 = sshll.u32 [#allocation29], 4
      %s282 = int_to_ptr.vmem [resolvable:$true] %s281
      %287 = dma.hbm_to_vmem [thread:$0]  %s45, 1024, %s282, [#allocation30], 64, 64, 4
    $region93: #{_lambda_.1} parent=1 // pred_fallthru
      _
    // Predicated region
    $region94: #{_lambda_.1} parent=1 // pred_check
      _
    $region95: #{_lambda_.1} parent=1 // pred_check_branch
      %289 = sbr.rel (0) target = $region97
    $region96: #{_lambda_.1} parent=1 // pred_region
      %s291 = ssub.s32 1024, 1024
      %292 = vsyncadd [#allocation30], %s291
      %s293 = sshll.u32 [#allocation31], 4
      %s294 = int_to_ptr.vmem [resolvable:$true] %s293
      %299 = dma.hbm_to_vmem [thread:$0]  %s47, 1024, %s294, [#allocation30], 64, 64, 4
    $region97: #{_lambda_.1} parent=1 // pred_fallthru
      _
    // Predicated region
    $region98: #{_lambda_.1} parent=1 // pred_check
      _
    $region99: #{_lambda_.1} parent=1 // pred_check_branch
      %301 = sbr.rel (0) target = $region101
    $region100: #{_lambda_.1} parent=1 // pred_region
      %s303 = ssub.s32 16, 16
      %304 = vsyncadd [#allocation33], %s303
      %s306 = sshll.u32 [#allocation32], 4
      %s307 = int_to_ptr.vmem [resolvable:$true] %s306
      %309 = dma.hbm_to_vmem [thread:$0]  %s49, 16, %s307, [#allocation33]
    $region101: #{_lambda_.1} parent=1 // pred_fallthru
      _
    // Predicated region
    $region102: #{_lambda_.1} parent=1 // pred_check
      _
    $region103: #{_lambda_.1} parent=1 // pred_check_branch
      %311 = sbr.rel (0) target = $region105
    $region104: #{_lambda_.1} parent=1 // pred_region
      %s313 = ssub.s32 1024, 1024
      %314 = vsyncadd [#allocation33], %s313
      %s315 = sshll.u32 [#allocation34], 4
      %s316 = int_to_ptr.vmem [resolvable:$true] %s315
      %321 = dma.hbm_to_vmem [thread:$0]  %s51, 1024, %s316, [#allocation33], 64, 64, 4
    $region105: #{_lambda_.1} parent=1 // pred_fallthru
      _
    // Predicated region
    $region106: #{_lambda_.1} parent=1 // pred_check
      _
    $region107: #{_lambda_.1} parent=1 // pred_check_branch
      %323 = sbr.rel (0) target = $region109
    $region108: #{_lambda_.1} parent=1 // pred_region
      %s325 = ssub.s32 16, 16
      %326 = vsyncadd [#allocation36], %s325
      %s328 = sshll.u32 [#allocation35], 4
      %s329 = int_to_ptr.vmem [resolvable:$true] %s328
      %331 = dma.hbm_to_vmem [thread:$0]  %s53, 16, %s329, [#allocation36]
    $region109: #{_lambda_.1} parent=1 // pred_fallthru
      _
    // Predicated region
    $region110: #{_lambda_.1} parent=1 // pred_check
      _
    $region111: #{_lambda_.1} parent=1 // pred_check_branch
      %333 = sbr.rel (0) target = $region113
    $region112: #{_lambda_.1} parent=1 // pred_region
      _
    $region113: #{_lambda_.1} parent=1 // pred_fallthru
      _
    // Predicated region
    $region114: #{_lambda_.1} parent=1 // pred_check
      _
    $region115: #{_lambda_.1} parent=1 // pred_check_branch
      %335 = sbr.rel (0) target = $region117
    $region116: #{_lambda_.1} parent=1 // pred_region
      _
    $region117: #{_lambda_.1} parent=1 // pred_fallthru
      _
    // Predicated region
    $region118: #{_lambda_.1} parent=1 // pred_check
      _
    $region119: #{_lambda_.1} parent=1 // pred_check_branch
      %337 = sbr.rel (0) target = $region121
    $region120: #{_lambda_.1} parent=1 // pred_region
      %338 = dma.done [#allocation4], 256
    $region121: #{_lambda_.1} parent=1 // pred_fallthru
      _
    // Predicated region
    $region122: #{_lambda_.1} parent=1 // pred_check
      _
    $region123: #{_lambda_.1} parent=1 // pred_check_branch
      %340 = sbr.rel (0) target = $region125
    $region124: #{_lambda_.1} parent=1 // pred_region
      %341 = dma.done [#allocation6], 256
    $region125: #{_lambda_.1} parent=1 // pred_fallthru
      _
    // Predicated region
    $region126: #{_lambda_.1} parent=1 // pred_check
      _
    $region127: #{_lambda_.1} parent=1 // pred_check_branch
      %343 = sbr.rel (0) target = $region129
    $region128: #{_lambda_.1} parent=1 // pred_region
      %344 = dma.done [#allocation6], 256
    $region129: #{_lambda_.1} parent=1 // pred_fallthru
      _
    // Predicated region
    $region130: #{_lambda_.1} parent=1 // pred_check
      _
    $region131: #{_lambda_.1} parent=1 // pred_check_branch
      %346 = sbr.rel (0) target = $region133
    $region132: #{_lambda_.1} parent=1 // pred_region
      %347 = dma.done [#allocation9], 1024
    $region133: #{_lambda_.1} parent=1 // pred_fallthru
      _
    // Predicated region
    $region134: #{_lambda_.1} parent=1 // pred_check
      _
    $region135: #{_lambda_.1} parent=1 // pred_check_branch
      %349 = sbr.rel (0) target = $region137
    $region136: #{_lambda_.1} parent=1 // pred_region
      %350 = dma.done [#allocation9], 768
    $region137: #{_lambda_.1} parent=1 // pred_fallthru
      _
    // Predicated region
    $region138: #{_lambda_.1} parent=1 // pred_check
      _
    $region139: #{_lambda_.1} parent=1 // pred_check_branch
      %352 = sbr.rel (0) target = $region141
    $region140: #{_lambda_.1} parent=1 // pred_region
      %353 = dma.done [#allocation12], 48
    $region141: #{_lambda_.1} parent=1 // pred_fallthru
      _
    // Predicated region
    $region142: #{_lambda_.1} parent=1 // pred_check
      _
    $region143: #{_lambda_.1} parent=1 // pred_check_branch
      %355 = sbr.rel (0) target = $region145
    $region144: #{_lambda_.1} parent=1 // pred_region
      %356 = dma.done [#allocation12], 256
    $region145: #{_lambda_.1} parent=1 // pred_fallthru
      _
    // Predicated region
    $region146: #{_lambda_.1} parent=1 // pred_check
      _
    $region147: #{_lambda_.1} parent=1 // pred_check_branch
      %358 = sbr.rel (0) target = $region149
    $region148: #{_lambda_.1} parent=1 // pred_region
      %359 = dma.done [#allocation15], 16
    $region149: #{_lambda_.1} parent=1 // pred_fallthru
      _
    // Predicated region
    $region150: #{_lambda_.1} parent=1 // pred_check
      _
    $region151: #{_lambda_.1} parent=1 // pred_check_branch
      %361 = sbr.rel (0) target = $region153
    $region152: #{_lambda_.1} parent=1 // pred_region
      %362 = dma.done [#allocation15], 16
    $region153: #{_lambda_.1} parent=1 // pred_fallthru
      _
    // Predicated region
    $region154: #{_lambda_.1} parent=1 // pred_check
      _
    $region155: #{_lambda_.1} parent=1 // pred_check_branch
      %364 = sbr.rel (0) target = $region157
    $region156: #{_lambda_.1} parent=1 // pred_region
      %365 = dma.done [#allocation18], 3072
    $region157: #{_lambda_.1} parent=1 // pred_fallthru
      _
    // Predicated region
    $region158: #{_lambda_.1} parent=1 // pred_check
      _
    $region159: #{_lambda_.1} parent=1 // pred_check_branch
      %367 = sbr.rel (0) target = $region161
    $region160: #{_lambda_.1} parent=1 // pred_region
      %368 = dma.done [#allocation18], 48
    $region161: #{_lambda_.1} parent=1 // pred_fallthru
      _
    // Predicated region
    $region162: #{_lambda_.1} parent=1 // pred_check
      _
    $region163: #{_lambda_.1} parent=1 // pred_check_branch
      %370 = sbr.rel (0) target = $region165
    $region164: #{_lambda_.1} parent=1 // pred_region
      %371 = dma.done [#allocation21], 16
    $region165: #{_lambda_.1} parent=1 // pred_fallthru
      _
    // Predicated region
    $region166: #{_lambda_.1} parent=1 // pred_check
      _
    $region167: #{_lambda_.1} parent=1 // pred_check_branch
      %373 = sbr.rel (0) target = $region169
    $region168: #{_lambda_.1} parent=1 // pred_region
      %374 = dma.done [#allocation21], 16
    $region169: #{_lambda_.1} parent=1 // pred_fallthru
      _
    // Predicated region
    $region170: #{_lambda_.1} parent=1 // pred_check
      _
    $region171: #{_lambda_.1} parent=1 // pred_check_branch
      %376 = sbr.rel (0) target = $region173
    $region172: #{_lambda_.1} parent=1 // pred_region
      %377 = dma.done [#allocation24], 1024
    $region173: #{_lambda_.1} parent=1 // pred_fallthru
      _
    // Predicated region
    $region174: #{_lambda_.1} parent=1 // pred_check
      _
    $region175: #{_lambda_.1} parent=1 // pred_check_branch
      %379 = sbr.rel (0) target = $region177
    $region176: #{_lambda_.1} parent=1 // pred_region
      %380 = dma.done [#allocation24], 16
    $region177: #{_lambda_.1} parent=1 // pred_fallthru
      _
    // Predicated region
    $region178: #{_lambda_.1} parent=1 // pred_check
      _
    $region179: #{_lambda_.1} parent=1 // pred_check_branch
      %382 = sbr.rel (0) target = $region181
    $region180: #{_lambda_.1} parent=1 // pred_region
      %383 = dma.done [#allocation27], 1024
    $region181: #{_lambda_.1} parent=1 // pred_fallthru
      _
    // Predicated region
    $region182: #{_lambda_.1} parent=1 // pred_check
      _
    $region183: #{_lambda_.1} parent=1 // pred_check_branch
      %385 = sbr.rel (0) target = $region185
    $region184: #{_lambda_.1} parent=1 // pred_region
      %386 = dma.done [#allocation27], 16
    $region185: #{_lambda_.1} parent=1 // pred_fallthru
      _
    // Predicated region
    $region186: #{_lambda_.1} parent=1 // pred_check
      _
    $region187: #{_lambda_.1} parent=1 // pred_check_branch
      %388 = sbr.rel (0) target = $region189
    $region188: #{_lambda_.1} parent=1 // pred_region
      %389 = dma.done [#allocation30], 1024
    $region189: #{_lambda_.1} parent=1 // pred_fallthru
      _
    // Predicated region
    $region190: #{_lambda_.1} parent=1 // pred_check
      _
    $region191: #{_lambda_.1} parent=1 // pred_check_branch
      %391 = sbr.rel (0) target = $region193
    $region192: #{_lambda_.1} parent=1 // pred_region
      %392 = dma.done [#allocation30], 1024
    $region193: #{_lambda_.1} parent=1 // pred_fallthru
      _
    // Predicated region
    $region194: #{_lambda_.1} parent=1 // pred_check
      _
    $region195: #{_lambda_.1} parent=1 // pred_check_branch
      %394 = sbr.rel (0) target = $region197
    $region196: #{_lambda_.1} parent=1 // pred_region
      %395 = dma.done [#allocation33], 16
    $region197: #{_lambda_.1} parent=1 // pred_fallthru
      _
    // Predicated region
    $region198: #{_lambda_.1} parent=1 // pred_check
      _
    $region199: #{_lambda_.1} parent=1 // pred_check_branch
      %397 = sbr.rel (0) target = $region201
    $region200: #{_lambda_.1} parent=1 // pred_region
      %398 = dma.done [#allocation33], 1024
    $region201: #{_lambda_.1} parent=1 // pred_fallthru
      _
    // Predicated region
    $region202: #{_lambda_.1} parent=1 // pred_check
      _
    $region203: #{_lambda_.1} parent=1 // pred_check_branch
      %400 = sbr.rel (0) target = $region205
    $region204: #{_lambda_.1} parent=1 // pred_region
      %401 = dma.done [#allocation36], 16
    $region205: #{_lambda_.1} parent=1 // pred_fallthru
      _
    %v403 = vld [vmem:[#allocation5] sm:$0xf]
    %v404 = vld [vmem:[#allocation5 + $0x4] sm:$0xf]
    %v405 = vld [vmem:[#allocation5 + $0x8] sm:$0xf]
    %v406 = vld [vmem:[#allocation5 + $0xc] sm:$0xf]
    %v407 = vld [vmem:[#allocation7] sm:$0xf]
    %v408 = vld [vmem:[#allocation7 + $0x4] sm:$0xf]
    %v409 = vld [vmem:[#allocation7 + $0x8] sm:$0xf]
    %v410 = vld [vmem:[#allocation7 + $0xc] sm:$0xf]
    %v411 = vld [vmem:[%s9] sm:$0xf]
    %v412 = vld [vmem:[%s9 + $0x4] sm:$0xf]
    %v413 = vld [vmem:[#allocation8] sm:$0xf]
    %v414 = vld [vmem:[#allocation8 + $0x4] sm:$0xf]
    %v415 = vld [vmem:[#allocation8 + $0x8] sm:$0xf]
    %v416 = vld [vmem:[#allocation8 + $0xc] sm:$0xf]
    %v417 = vld [vmem:[#allocation8 + $0x10] sm:$0xf]
    %v418 = vld [vmem:[#allocation8 + $0x14] sm:$0xf]
    %v419 = vld [vmem:[#allocation8 + $0x18] sm:$0xf]
    %v420 = vld [vmem:[#allocation8 + $0x1c] sm:$0xf]
    %v421 = vld [vmem:[#allocation8 + $0x20] sm:$0xf]
    %v422 = vld [vmem:[#allocation8 + $0x24] sm:$0xf]
    %v423 = vld [vmem:[#allocation8 + $0x28] sm:$0xf]
    %v424 = vld [vmem:[#allocation8 + $0x2c] sm:$0xf]
    %v425 = vld [vmem:[#allocation8 + $0x30] sm:$0xf]
    %v426 = vld [vmem:[#allocation8 + $0x34] sm:$0xf]
    %v427 = vld [vmem:[#allocation8 + $0x38] sm:$0xf]
    %v428 = vld [vmem:[#allocation8 + $0x3c] sm:$0xf]
    %v429 = vld [vmem:[#allocation3] sm:$0xff]
    %v430 = vld [vmem:[#allocation3 + $0x8] sm:$0xff]
    %v431 = vld [vmem:[%s3] sm:$0xff]
    %v432 = vld [vmem:[%s3 + $0x8] sm:$0xff]
    %v433 = vld [vmem:[%s3 + $0x10] sm:$0xff]
    %v434 = vld [vmem:[%s3 + $0x18] sm:$0xff]
    %v435 = vld [vmem:[#allocation10] sm:$0xff]
    %v436 = vld [vmem:[#allocation10 + $0x8] sm:$0xf]
    %v437 = vld [vmem:[#allocation10 + $0xc] sm:$0xff]
    %v438 = vld [vmem:[#allocation10 + $0x14] sm:$0xf]
    %v439 = vld [vmem:[#allocation10 + $0x18] sm:$0xff]
    %v440 = vld [vmem:[#allocation10 + $0x20] sm:$0xf]
    %v441 = vld [vmem:[#allocation10 + $0x24] sm:$0xff]
    %v442 = vld [vmem:[#allocation10 + $0x2c] sm:$0xf]
    %v443 = vld [vmem:[#allocation11] sm:$0x7]
    %v444 = vld [vmem:[#allocation13] sm:$0xf]
    %v445 = vld [vmem:[#allocation13 + $0x4] sm:$0xf]
    %v446 = vld [vmem:[#allocation13 + $0x8] sm:$0xf]
    %v447 = vld [vmem:[#allocation13 + $0xc] sm:$0xf]
    %v448 = vld [vmem:[#allocation14] sm:$0x1]
    %v449 = vld [vmem:[#allocation16] sm:$0x1]
    %v450 = vpack.c.bf16 %v430, %v429
    %v452 = vlaneseq
    %v453 = vshrl.u32 %v452, 7
    %v454 = vsub.s32 0, %v453
    %v455 = vrot.slane %v443, %v454
    %v456 = vlaneseq
    %v457 = vshrl.u32 %v456, 7
    %v458 = vsub.s32 1, %v457
    %v459 = vrot.slane %v443, %v458
    %v460 = vlaneseq
    %v461 = vshrl.u32 %v460, 7
    %v462 = vsub.s32 2, %v461
    %v463 = vrot.slane %v443, %v462
    %v475 = vunpack.c.l.b16 %v435
    %v476 = vunpack.c.h.b16 %v435
    %v477 = vunpack.c.l.b16 %v436
    %v478 = vunpack.c.l.b16 %v437
    %v479 = vunpack.c.h.b16 %v437
    %v480 = vunpack.c.l.b16 %v438
    %v481 = vunpack.c.l.b16 %v439
    %v482 = vunpack.c.h.b16 %v439
    %v483 = vunpack.c.l.b16 %v440
    %v484 = vunpack.c.l.b16 %v441
    %v485 = vunpack.c.h.b16 %v441
    %v486 = vunpack.c.l.b16 %v442
    %v487 = vpack.c.b16 %v478, %v475
    %v488 = vpack.c.b16 %v479, %v476
    %v489 = vpack.c.b16 %v480, %v477
    %v490 = vpack.c.b16 %v484, %v481
    %v491 = vpack.c.b16 %v485, %v482
    %v492 = vpack.c.b16 %v486, %v483
    %vm499 = vcmask 261120
    %v501 = vsel %vm499, %v450, 0
    %503 = vmatprep.subr.bf16.mxu0 0
    %504 = vmatpush1.bf16.msra.mxu0 0
    %505 = vmatprep.subr.bf16.mxu0 0
    %506 = vmatpush1.bf16.msra.mxu0 0
    %507 = vmatprep.subr.bf16.mxu0 0
    %508 = vmatpush1.bf16.msra.mxu0 0
    %509 = vmatprep.subr.bf16.mxu0 0
    %510 = vmatpush1.bf16.msra.mxu0 0
    %511 = vmatprep.subr.bf16.mxu0 0
    %512 = vmatpush1.bf16.msra.mxu0 0
    %513 = vmatprep.subr.bf16.mxu0 0
    %514 = vmatpush1.bf16.msra.mxu0 0
    %515 = vmatprep.subr.bf16.mxu0 %v491
    %516 = vmatpush1.bf16.msra.mxu0 %v490
    %517 = vmatprep.subr.bf16.mxu0 %v488
    %518 = vmatpush1.bf16.msra.mxu0 %v487
    %519 = vmatprep.subr.bf16.mxu0 0
    %520 = vmatpush2.bf16.msra.mxu0 0
    %521 = vmatprep.subr.bf16.mxu0 0
    %522 = vmatpush2.bf16.msra.mxu0 0
    %523 = vmatprep.subr.bf16.mxu0 0
    %524 = vmatpush2.bf16.msra.mxu0 0
    %525 = vmatprep.subr.bf16.mxu0 0
    %526 = vmatpush2.bf16.msra.mxu0 0
    %527 = vmatprep.subr.bf16.mxu0 0
    %528 = vmatpush2.bf16.msra.mxu0 0
    %529 = vmatprep.subr.bf16.mxu0 0
    %530 = vmatpush2.bf16.msra.mxu0 0
    %531 = vmatprep.subr.bf16.mxu0 0
    %532 = vmatpush2.bf16.msra.mxu0 0
    %533 = vmatprep.subr.bf16.mxu0 0
    %534 = vmatpush2.bf16.msra.mxu0 0
    %535 = vmatprep.mubr.bf16.mxu0 0
    %536 = vmatmul.mubr.bf16.gmra.mxu0 %v501
    %v537 = vpop.f32.mrf.mxu0
    %v538 = vadd.f32 %v455, %v537
    %v539 = vpop.f32.mrf.mxu0
    %v540 = vadd.f32 %v459, %v539
    %v541 = vpop.f32.mrf.mxu0
    %v542 = vadd.f32 %v455, %v541
    %v543 = vpop.f32.mrf.mxu0
    %v544 = vadd.f32 %v459, %v543
    %545 = vdwg.mxu0
    %546 = vmatprep.subr.bf16.mxu0 0
    %547 = vmatpush1.bf16.msra.mxu0 0
    %548 = vmatprep.subr.bf16.mxu0 0
    %549 = vmatpush1.bf16.msra.mxu0 0
    %550 = vmatprep.subr.bf16.mxu0 0
    %551 = vmatpush1.bf16.msra.mxu0 0
    %552 = vmatprep.subr.bf16.mxu0 0
    %553 = vmatpush1.bf16.msra.mxu0 0
    %554 = vmatprep.subr.bf16.mxu0 0
    %555 = vmatpush1.bf16.msra.mxu0 0
    %556 = vmatprep.subr.bf16.mxu0 0
    %557 = vmatpush1.bf16.msra.mxu0 0
    %558 = vmatprep.subr.bf16.mxu0 0
    %559 = vmatpush1.bf16.msra.mxu0 %v492
    %560 = vmatprep.subr.bf16.mxu0 0
    %561 = vmatpush1.bf16.msra.mxu0 %v489
    %562 = vmatprep.subr.bf16.mxu0 0
    %563 = vmatpush2.bf16.msra.mxu0 0
    %564 = vmatprep.subr.bf16.mxu0 0
    %565 = vmatpush2.bf16.msra.mxu0 0
    %566 = vmatprep.subr.bf16.mxu0 0
    %567 = vmatpush2.bf16.msra.mxu0 0
    %568 = vmatprep.subr.bf16.mxu0 0
    %569 = vmatpush2.bf16.msra.mxu0 0
    %570 = vmatprep.subr.bf16.mxu0 0
    %571 = vmatpush2.bf16.msra.mxu0 0
    %572 = vmatprep.subr.bf16.mxu0 0
    %573 = vmatpush2.bf16.msra.mxu0 0
    %574 = vmatprep.subr.bf16.mxu0 0
    %575 = vmatpush2.bf16.msra.mxu0 0
    %576 = vmatprep.subr.bf16.mxu0 0
    %577 = vmatpush2.bf16.msra.mxu0 0
    %578 = vmatprep.mubr.bf16.mxu0 0
    %579 = vmatmul.mubr.bf16.gmra.mxu0 %v501
    %v580 = vpop.f32.mrf.mxu0
    %v581 = vadd.f32 %v463, %v580
    %v582 = vpop.f32.mrf.mxu0
    %v583 = vpop.f32.mrf.mxu0
    %v584 = vadd.f32 %v463, %v583
    %v585 = vpop.f32.mrf.mxu0
    %586 = vdwg.mxu0
    %v587 = vpack.c.bf16 %v432, %v431
    %v588 = vpack.c.bf16 %v434, %v433
    %v590 = vlaneseq
    %v591 = vshrl.u32 %v590, 7
    %v592 = vsub.s32 0, %v591
    %v593 = vrot.slane %v448, %v592
    %v599 = vunpack.c.l.b16 %v444
    %v600 = vunpack.c.l.b16 %v445
    %v601 = vunpack.c.l.b16 %v446
    %v602 = vunpack.c.l.b16 %v447
    %v603 = vpack.c.b16 %v600, %v599
    %v604 = vpack.c.b16 %v602, %v601
    %v608 = vsel %vm499, %v587, 0
    %v611 = vsel %vm499, %v588, 0
    %613 = vmatprep.subr.bf16.mxu0 0
    %614 = vmatpush1.bf16.msra.mxu0 0
    %615 = vmatprep.subr.bf16.mxu0 0
    %616 = vmatpush1.bf16.msra.mxu0 0
    %617 = vmatprep.subr.bf16.mxu0 0
    %618 = vmatpush1.bf16.msra.mxu0 0
    %619 = vmatprep.subr.bf16.mxu0 0
    %620 = vmatpush1.bf16.msra.mxu0 0
    %621 = vmatprep.subr.bf16.mxu0 0
    %622 = vmatpush1.bf16.msra.mxu0 0
    %623 = vmatprep.subr.bf16.mxu0 0
    %624 = vmatpush1.bf16.msra.mxu0 0
    %625 = vmatprep.subr.bf16.mxu0 0
    %626 = vmatpush1.bf16.msra.mxu0 %v604
    %627 = vmatprep.subr.bf16.mxu0 0
    %628 = vmatpush1.bf16.msra.mxu0 %v603
    %629 = vmatprep.subr.bf16.mxu0 0
    %630 = vmatpush2.bf16.msra.mxu0 0
    %631 = vmatprep.subr.bf16.mxu0 0
    %632 = vmatpush2.bf16.msra.mxu0 0
    %633 = vmatprep.subr.bf16.mxu0 0
    %634 = vmatpush2.bf16.msra.mxu0 0
    %635 = vmatprep.subr.bf16.mxu0 0
    %636 = vmatpush2.bf16.msra.mxu0 0
    %637 = vmatprep.subr.bf16.mxu0 0
    %638 = vmatpush2.bf16.msra.mxu0 0
    %639 = vmatprep.subr.bf16.mxu0 0
    %640 = vmatpush2.bf16.msra.mxu0 0
    %641 = vmatprep.subr.bf16.mxu0 0
    %642 = vmatpush2.bf16.msra.mxu0 0
    %643 = vmatprep.subr.bf16.mxu0 0
    %644 = vmatpush2.bf16.msra.mxu0 0
    %645 = vmatprep.mubr.bf16.mxu0 0
    %646 = vmatmul.mubr.bf16.gmra.mxu0 %v608
    %v647 = vpop.f32.mrf.mxu0
    %v648 = vadd.f32 %v593, %v647
    %v649 = vpop.f32.mrf.mxu0
    %v650 = vpop.f32.mrf.mxu0
    %v651 = vadd.f32 %v593, %v650
    %v652 = vpop.f32.mrf.mxu0
    %653 = vmatprep.mubr.bf16.mxu0 0
    %654 = vmatmul.mubr.bf16.gmra.mxu0 %v611
    %v655 = vpop.f32.mrf.mxu0
    %v656 = vadd.f32 %v593, %v655
    %v657 = vpop.f32.mrf.mxu0
    %v658 = vpop.f32.mrf.mxu0
    %v659 = vadd.f32 %v593, %v658
    %v660 = vpop.f32.mrf.mxu0
    %661 = vdwg.mxu0
    %v662 = vpack.c.bf16 %v542, %v538
    %v663 = vpack.c.bf16 %v544, %v540
    %v668 = vunpack.c.l.b16 %v407
    %v669 = vunpack.c.l.b16 %v408
    %v670 = vunpack.c.l.b16 %v409
    %v671 = vunpack.c.l.b16 %v410
    %v672 = vpack.c.b16 %v669, %v668
    %v673 = vpack.c.b16 %v671, %v670
    %vm674 = vcmask 130048
    %v676 = vsel %vm674, %v672, 0
    %v679 = vsel %vm674, %v673, 0
    %681 = vmatprep.subr.bf16.mxu0 0
    %682 = vmatpush1.bf16.msra.mxu0 0
    %683 = vmatprep.subr.bf16.mxu0 0
    %684 = vmatpush1.bf16.msra.mxu0 0
    %685 = vmatprep.subr.bf16.mxu0 0
    %686 = vmatpush1.bf16.msra.mxu0 0
    %687 = vmatprep.subr.bf16.mxu0 0
    %688 = vmatpush1.bf16.msra.mxu0 0
    %689 = vmatprep.subr.bf16.mxu0 0
    %690 = vmatpush1.bf16.msra.mxu0 0
    %691 = vmatprep.subr.bf16.mxu0 0
    %692 = vmatpush1.bf16.msra.mxu0 0
    %693 = vmatprep.subr.bf16.mxu0 0
    %694 = vmatpush1.bf16.msra.mxu0 0
    %695 = vmatprep.subr.bf16.mxu0 0
    %696 = vmatpush1.bf16.msra.mxu0 %v663
    %697 = vmatprep.subr.bf16.mxu0 0
    %698 = vmatpush2.bf16.msra.mxu0 0
    %699 = vmatprep.subr.bf16.mxu0 0
    %700 = vmatpush2.bf16.msra.mxu0 0
    %701 = vmatprep.subr.bf16.mxu0 0
    %702 = vmatpush2.bf16.msra.mxu0 0
    %703 = vmatprep.subr.bf16.mxu0 0
    %704 = vmatpush2.bf16.msra.mxu0 0
    %705 = vmatprep.subr.bf16.mxu0 0
    %706 = vmatpush2.bf16.msra.mxu0 0
    %707 = vmatprep.subr.bf16.mxu0 0
    %708 = vmatpush2.bf16.msra.mxu0 0
    %709 = vmatprep.subr.bf16.mxu0 0
    %710 = vmatpush2.bf16.msra.mxu0 0
    %711 = vmatprep.subr.bf16.mxu0 0
    %712 = vmatpush2.bf16.msra.mxu0 0
    %713 = vmatprep.mubr.bf16.mxu0 0
    %714 = vmatmul.mubr.bf16.gmra.mxu0 %v676
    %v715 = vpop.f32.mrf.mxu0
    %v716 = vadd.f32 0.0, %v715
    %v717 = vpop.f32.mrf.mxu0
    %v718 = vpop.f32.mrf.mxu0
    %v719 = vadd.f32 0.0, %v718
    %v720 = vpop.f32.mrf.mxu0
    %721 = vmatprep.mubr.bf16.mxu0 0
    %722 = vmatmul.mubr.bf16.gmra.mxu0 %v679
    %v723 = vpop.f32.mrf.mxu0
    %v724 = vadd.f32 0.0, %v723
    %v725 = vpop.f32.mrf.mxu0
    %v726 = vpop.f32.mrf.mxu0
    %v727 = vadd.f32 0.0, %v726
    %v728 = vpop.f32.mrf.mxu0
    %729 = vdwg.mxu0
    %v734 = vunpack.c.l.b16 %v403
    %v735 = vunpack.c.l.b16 %v404
    %v736 = vunpack.c.l.b16 %v405
    %v737 = vunpack.c.l.b16 %v406
    %v738 = vpack.c.b16 %v735, %v734
    %v739 = vpack.c.b16 %v737, %v736
    %v741 = vsel %vm674, %v738, 0
    %v744 = vsel %vm674, %v739, 0
    %746 = vmatprep.subr.bf16.mxu0 0
    %747 = vmatpush1.bf16.msra.mxu0 0
    %748 = vmatprep.subr.bf16.mxu0 0
    %749 = vmatpush1.bf16.msra.mxu0 0
    %750 = vmatprep.subr.bf16.mxu0 0
    %751 = vmatpush1.bf16.msra.mxu0 0
    %752 = vmatprep.subr.bf16.mxu0 0
    %753 = vmatpush1.bf16.msra.mxu0 0
    %754 = vmatprep.subr.bf16.mxu0 0
    %755 = vmatpush1.bf16.msra.mxu0 0
    %756 = vmatprep.subr.bf16.mxu0 0
    %757 = vmatpush1.bf16.msra.mxu0 0
    %758 = vmatprep.subr.bf16.mxu0 0
    %759 = vmatpush1.bf16.msra.mxu0 0
    %760 = vmatprep.subr.bf16.mxu0 0
    %761 = vmatpush1.bf16.msra.mxu0 %v662
    %762 = vmatprep.subr.bf16.mxu0 0
    %763 = vmatpush2.bf16.msra.mxu0 0
    %764 = vmatprep.subr.bf16.mxu0 0
    %765 = vmatpush2.bf16.msra.mxu0 0
    %766 = vmatprep.subr.bf16.mxu0 0
    %767 = vmatpush2.bf16.msra.mxu0 0
    %768 = vmatprep.subr.bf16.mxu0 0
    %769 = vmatpush2.bf16.msra.mxu0 0
    %770 = vmatprep.subr.bf16.mxu0 0
    %771 = vmatpush2.bf16.msra.mxu0 0
    %772 = vmatprep.subr.bf16.mxu0 0
    %773 = vmatpush2.bf16.msra.mxu0 0
    %774 = vmatprep.subr.bf16.mxu0 0
    %775 = vmatpush2.bf16.msra.mxu0 0
    %776 = vmatprep.subr.bf16.mxu0 0
    %777 = vmatpush2.bf16.msra.mxu0 0
    %778 = vmatprep.mubr.bf16.mxu0 0
    %779 = vmatmul.mubr.bf16.gmra.mxu0 %v741
    %v780 = vpop.f32.mrf.mxu0
    %v781 = vadd.f32 %v716, %v780
    %v782 = vpop.f32.mrf.mxu0
    %v783 = vpop.f32.mrf.mxu0
    %v784 = vadd.f32 %v719, %v783
    %v785 = vpop.f32.mrf.mxu0
    %786 = vmatprep.mubr.bf16.mxu0 0
    %787 = vmatmul.mubr.bf16.gmra.mxu0 %v744
    %v788 = vpop.f32.mrf.mxu0
    %v789 = vadd.f32 %v724, %v788
    %v790 = vpop.f32.mrf.mxu0
    %v791 = vpop.f32.mrf.mxu0
    %v792 = vadd.f32 %v727, %v791
    %v793 = vpop.f32.mrf.mxu0
    %794 = vdwg.mxu0
    %v795 = vadd.f32 %v781, %v648
    %v796 = vadd.f32 %v784, %v651
    %v797 = vadd.f32 %v789, %v656
    %v798 = vadd.f32 %v792, %v659
    %vm799 = vcmp.gt.f32.partialorder %v795, 0.0
    %vm800 = vcmp.gt.f32.partialorder %v796, 0.0
    %vm801 = vcmp.gt.f32.partialorder %v797, 0.0
    %vm802 = vcmp.gt.f32.partialorder %v798, 0.0
    %v803 = vmul.f32 %v795, 0.01
    %v804 = vmul.f32 %v796, 0.01
    %v805 = vmul.f32 %v797, 0.01
    %v806 = vmul.f32 %v798, 0.01
    %v807 = vsel %vm799, %v795, %v803
    %v808 = vsel %vm800, %v796, %v804
    %v809 = vsel %vm801, %v797, %v805
    %v810 = vsel %vm802, %v798, %v806
    %v812 = vlaneseq
    %v813 = vshrl.u32 %v812, 7
    %v814 = vsub.s32 0, %v813
    %v815 = vrot.slane %v449, %v814
    %v817 = vmul.f32 %v807, %v815
    %v818 = vmul.f32 %v808, %v815
    %v819 = vmul.f32 %v809, %v815
    %v820 = vmul.f32 %v810, %v815
    %v821 = vpack.c.bf16 %v818, %v817
    %v822 = vpack.c.bf16 %v820, %v819
    %v839 = vunpack.c.l.b16 %v413
    %v840 = vunpack.c.l.b16 %v414
    %v841 = vunpack.c.l.b16 %v415
    %v842 = vunpack.c.l.b16 %v416
    %v843 = vunpack.c.l.b16 %v417
    %v844 = vunpack.c.l.b16 %v418
    %v845 = vunpack.c.l.b16 %v419
    %v846 = vunpack.c.l.b16 %v420
    %v847 = vunpack.c.l.b16 %v421
    %v848 = vunpack.c.l.b16 %v422
    %v849 = vunpack.c.l.b16 %v423
    %v850 = vunpack.c.l.b16 %v424
    %v851 = vunpack.c.l.b16 %v425
    %v852 = vunpack.c.l.b16 %v426
    %v853 = vunpack.c.l.b16 %v427
    %v854 = vunpack.c.l.b16 %v428
    %v855 = vpack.c.b16 %v840, %v839
    %v856 = vpack.c.b16 %v842, %v841
    %v857 = vpack.c.b16 %v844, %v843
    %v858 = vpack.c.b16 %v846, %v845
    %v859 = vpack.c.b16 %v848, %v847
    %v860 = vpack.c.b16 %v850, %v849
    %v861 = vpack.c.b16 %v852, %v851
    %v862 = vpack.c.b16 %v854, %v853
    %871 = vmatprep.subr.bf16.mxu0 0
    %872 = vmatpush1.bf16.msra.mxu0 %v862
    %873 = vmatprep.subr.bf16.mxu0 0
    %874 = vmatpush1.bf16.msra.mxu0 %v861
    %875 = vmatprep.subr.bf16.mxu0 0
    %876 = vmatpush1.bf16.msra.mxu0 %v860
    %877 = vmatprep.subr.bf16.mxu0 0
    %878 = vmatpush1.bf16.msra.mxu0 %v859
    %879 = vmatprep.subr.bf16.mxu0 0
    %880 = vmatpush1.bf16.msra.mxu0 %v858
    %881 = vmatprep.subr.bf16.mxu0 0
    %882 = vmatpush1.bf16.msra.mxu0 %v857
    %883 = vmatprep.subr.bf16.mxu0 0
    %884 = vmatpush1.bf16.msra.mxu0 %v856
    %885 = vmatprep.subr.bf16.mxu0 0
    %886 = vmatpush1.bf16.msra.mxu0 %v855
    %887 = vmatprep.subr.bf16.mxu0 0
    %888 = vmatpush2.bf16.msra.mxu0 0
    %889 = vmatprep.subr.bf16.mxu0 0
    %890 = vmatpush2.bf16.msra.mxu0 0
    %891 = vmatprep.subr.bf16.mxu0 0
    %892 = vmatpush2.bf16.msra.mxu0 0
    %893 = vmatprep.subr.bf16.mxu0 0
    %894 = vmatpush2.bf16.msra.mxu0 0
    %895 = vmatprep.subr.bf16.mxu0 0
    %896 = vmatpush2.bf16.msra.mxu0 0
    %897 = vmatprep.subr.bf16.mxu0 0
    %898 = vmatpush2.bf16.msra.mxu0 0
    %899 = vmatprep.subr.bf16.mxu0 0
    %900 = vmatpush2.bf16.msra.mxu0 0
    %901 = vmatprep.subr.bf16.mxu0 0
    %902 = vmatpush2.bf16.msra.mxu0 0
    %903 = vmatprep.mubr.bf16.mxu0 0
    %904 = vmatmul.mubr.bf16.gmra.mxu0 %v821
    %v905 = vpop.f32.mrf.mxu0
    %v906 = vadd.f32 0.0, %v905
    %v907 = vpop.f32.mrf.mxu0
    %v908 = vpop.f32.mrf.mxu0
    %v909 = vadd.f32 0.0, %v908
    %v910 = vpop.f32.mrf.mxu0
    %911 = vmatprep.mubr.bf16.mxu0 0
    %912 = vmatmul.mubr.bf16.gmra.mxu0 %v822
    %v913 = vpop.f32.mrf.mxu0
    %v914 = vadd.f32 0.0, %v913
    %v915 = vpop.f32.mrf.mxu0
    %v916 = vpop.f32.mrf.mxu0
    %v917 = vadd.f32 0.0, %v916
    %v918 = vpop.f32.mrf.mxu0
    %919 = vdwg.mxu0
    %v920 = vmax.f32 %v906, %v909
    %v921 = vmax.f32 %v914, %v917
    %v922 = vmax.f32 %v920, %v921
    %923 = vmax.xlane.f32.xlu0 %v922
    %v924 = vpop.xlane.xlu0 %923
    %v925 = vrot.slane %v924, 4
    %v926 = vmax.f32 %v924, %v925
    %v927 = vrot.slane %v926, 2
    %v928 = vmax.f32 %v926, %v927
    %v929 = vrot.slane %v928, 1
    %v930 = vmax.f32 %v928, %v929
    %s931 = vtos %v930
    %v932 = vstv %s931
    %v933 = vsub.f32 %v906, %v932
    %v934 = vsub.f32 %v909, %v932
    %v935 = vsub.f32 %v914, %v932
    %v936 = vsub.f32 %v917, %v932
    %v937 = vmul.f32 %v933, 1.442695
    %v938 = vpow.pop %v937
    %v939 = vmul.f32 %v934, 1.442695
    %v940 = vpow.pop %v939
    %v941 = vmul.f32 %v935, 1.442695
    %v942 = vpow.pop %v941
    %v943 = vmul.f32 %v936, 1.442695
    %v944 = vpow.pop %v943
    %v945 = vpack.c.bf16 %v940, %v938
    %v946 = vpack.c.bf16 %v944, %v942
    %v949 = vunpack.c.l.b16 %v411
    %v950 = vunpack.c.l.b16 %v412
    %v951 = vpack.c.b16 %v950, %v949
    %v953 = vsel %vm499, %v951, 0
    %955 = vmatprep.subr.bf16.mxu0 0
    %956 = vmatpush1.bf16.msra.mxu0 0
    %957 = vmatprep.subr.bf16.mxu0 0
    %958 = vmatpush1.bf16.msra.mxu0 0
    %959 = vmatprep.subr.bf16.mxu0 0
    %960 = vmatpush1.bf16.msra.mxu0 0
    %961 = vmatprep.subr.bf16.mxu0 0
    %962 = vmatpush1.bf16.msra.mxu0 0
    %963 = vmatprep.subr.bf16.mxu0 0
    %964 = vmatpush1.bf16.msra.mxu0 0
    %965 = vmatprep.subr.bf16.mxu0 0
    %966 = vmatpush1.bf16.msra.mxu0 0
    %967 = vmatprep.subr.bf16.mxu0 0
    %968 = vmatpush1.bf16.msra.mxu0 %v946
    %969 = vmatprep.subr.bf16.mxu0 0
    %970 = vmatpush1.bf16.msra.mxu0 %v945
    %971 = vmatprep.subr.bf16.mxu0 0
    %972 = vmatpush2.bf16.msra.mxu0 0
    %973 = vmatprep.subr.bf16.mxu0 0
    %974 = vmatpush2.bf16.msra.mxu0 0
    %975 = vmatprep.subr.bf16.mxu0 0
    %976 = vmatpush2.bf16.msra.mxu0 0
    %977 = vmatprep.subr.bf16.mxu0 0
    %978 = vmatpush2.bf16.msra.mxu0 0
    %979 = vmatprep.subr.bf16.mxu0 0
    %980 = vmatpush2.bf16.msra.mxu0 0
    %981 = vmatprep.subr.bf16.mxu0 0
    %982 = vmatpush2.bf16.msra.mxu0 0
    %983 = vmatprep.subr.bf16.mxu0 0
    %984 = vmatpush2.bf16.msra.mxu0 0
    %985 = vmatprep.subr.bf16.mxu0 0
    %986 = vmatpush2.bf16.msra.mxu0 0
    %987 = vmatprep.mubr.bf16.mxu0 0
    %988 = vmatmul.mubr.bf16.gmra.mxu0 %v953
    %v989 = vpop.f32.mrf.mxu0
    %v990 = vadd.f32 0.0, %v989
    %v991 = vpop.f32.mrf.mxu0
    %v992 = vpop.f32.mrf.mxu0
    %v993 = vadd.f32 0.0, %v992
    %v994 = vpop.f32.mrf.mxu0
    %995 = vdwg.mxu0
    %v996 = vpack.c.bf16 %v993, %v990
    %997 = vmatprep.subr.bf16.mxu0 0
    %998 = vmatpush1.bf16.msra.mxu0 0
    %999 = vmatprep.subr.bf16.mxu0 0
    %1000 = vmatpush1.bf16.msra.mxu0 0
    %1001 = vmatprep.subr.bf16.mxu0 0
    %1002 = vmatpush1.bf16.msra.mxu0 0
    %1003 = vmatprep.subr.bf16.mxu0 0
    %1004 = vmatpush1.bf16.msra.mxu0 0
    %1005 = vmatprep.subr.bf16.mxu0 0
    %1006 = vmatpush1.bf16.msra.mxu0 0
    %1007 = vmatprep.subr.bf16.mxu0 0
    %1008 = vmatpush1.bf16.msra.mxu0 0
    %1009 = vmatprep.subr.bf16.mxu0 0
    %1010 = vmatpush1.bf16.msra.mxu0 0
    %1011 = vmatprep.subr.bf16.mxu0 0
    %1012 = vmatpush1.bf16.msra.mxu0 %v996
    %1013 = vmatprep.subr.bf16.mxu0 0
    %1014 = vmatpush2.bf16.msra.mxu0 0
    %1015 = vmatprep.subr.bf16.mxu0 0
    %1016 = vmatpush2.bf16.msra.mxu0 0
    %1017 = vmatprep.subr.bf16.mxu0 0
    %1018 = vmatpush2.bf16.msra.mxu0 0
    %1019 = vmatprep.subr.bf16.mxu0 0
    %1020 = vmatpush2.bf16.msra.mxu0 0
    %1021 = vmatprep.subr.bf16.mxu0 0
    %1022 = vmatpush2.bf16.msra.mxu0 0
    %1023 = vmatprep.subr.bf16.mxu0 0
    %1024 = vmatpush2.bf16.msra.mxu0 0
    %1025 = vmatprep.subr.bf16.mxu0 0
    %1026 = vmatpush2.bf16.msra.mxu0 0
    %1027 = vmatprep.subr.bf16.mxu0 0
    %1028 = vmatpush2.bf16.msra.mxu0 0
    %1029 = vmatprep.mubr.bf16.mxu0 0
    %1030 = vmatmul.mubr.bf16.gmra.mxu0 %v676
    %v1031 = vpop.f32.mrf.mxu0
    %v1032 = vadd.f32 0.0, %v1031
    %v1033 = vpop.f32.mrf.mxu0
    %v1034 = vpop.f32.mrf.mxu0
    %v1035 = vadd.f32 0.0, %v1034
    %v1036 = vpop.f32.mrf.mxu0
    %1037 = vmatprep.mubr.bf16.mxu0 0
    %1038 = vmatmul.mubr.bf16.gmra.mxu0 %v679
    %v1039 = vpop.f32.mrf.mxu0
    %v1040 = vadd.f32 0.0, %v1039
    %v1041 = vpop.f32.mrf.mxu0
    %v1042 = vpop.f32.mrf.mxu0
    %v1043 = vadd.f32 0.0, %v1042
    %v1044 = vpop.f32.mrf.mxu0
    %1045 = vdwg.mxu0
    %v1046 = vrcp.pop %v1032
    %v1047 = vrcp.pop %v1035
    %v1048 = vrcp.pop %v1040
    %v1049 = vrcp.pop %v1043
    %v1050 = vmul.f32 %v938, %v1046
    %v1051 = vmul.f32 %v940, %v1047
    %v1052 = vmul.f32 %v942, %v1048
    %v1053 = vmul.f32 %v944, %v1049
    %v1054 = vpack.c.bf16 %v584, %v581
    %1055 = vmatprep.subr.bf16.mxu0 0
    %1056 = vmatpush1.bf16.msra.mxu0 0
    %1057 = vmatprep.subr.bf16.mxu0 0
    %1058 = vmatpush1.bf16.msra.mxu0 0
    %1059 = vmatprep.subr.bf16.mxu0 0
    %1060 = vmatpush1.bf16.msra.mxu0 0
    %1061 = vmatprep.subr.bf16.mxu0 0
    %1062 = vmatpush1.bf16.msra.mxu0 0
    %1063 = vmatprep.subr.bf16.mxu0 0
    %1064 = vmatpush1.bf16.msra.mxu0 0
    %1065 = vmatprep.subr.bf16.mxu0 0
    %1066 = vmatpush1.bf16.msra.mxu0 0
    %1067 = vmatprep.subr.bf16.mxu0 0
    %1068 = vmatpush1.bf16.msra.mxu0 0
    %1069 = vmatprep.subr.bf16.mxu0 0
    %1070 = vmatpush1.bf16.msra.mxu0 %v1054
    %1071 = vmatprep.subr.bf16.mxu0 0
    %1072 = vmatpush2.bf16.msra.mxu0 0
    %1073 = vmatprep.subr.bf16.mxu0 0
    %1074 = vmatpush2.bf16.msra.mxu0 0
    %1075 = vmatprep.subr.bf16.mxu0 0
    %1076 = vmatpush2.bf16.msra.mxu0 0
    %1077 = vmatprep.subr.bf16.mxu0 0
    %1078 = vmatpush2.bf16.msra.mxu0 0
    %1079 = vmatprep.subr.bf16.mxu0 0
    %1080 = vmatpush2.bf16.msra.mxu0 0
    %1081 = vmatprep.subr.bf16.mxu0 0
    %1082 = vmatpush2.bf16.msra.mxu0 0
    %1083 = vmatprep.subr.bf16.mxu0 0
    %1084 = vmatpush2.bf16.msra.mxu0 0
    %1085 = vmatprep.subr.bf16.mxu0 0
    %1086 = vmatpush2.bf16.msra.mxu0 0
    %1087 = vmatprep.mubr.bf16.mxu0 0
    %1088 = vmatmul.mubr.bf16.gmra.mxu0 %v741
    %v1089 = vpop.f32.mrf.mxu0
    %v1090 = vadd.f32 0.0, %v1089
    %v1091 = vpop.f32.mrf.mxu0
    %v1092 = vpop.f32.mrf.mxu0
    %v1093 = vadd.f32 0.0, %v1092
    %v1094 = vpop.f32.mrf.mxu0
    %1095 = vmatprep.mubr.bf16.mxu0 0
    %1096 = vmatmul.mubr.bf16.gmra.mxu0 %v744
    %v1097 = vpop.f32.mrf.mxu0
    %v1098 = vadd.f32 0.0, %v1097
    %v1099 = vpop.f32.mrf.mxu0
    %v1100 = vpop.f32.mrf.mxu0
    %v1101 = vadd.f32 0.0, %v1100
    %v1102 = vpop.f32.mrf.mxu0
    %1103 = vdwg.mxu0
    %v1104 = vmul.f32 %v1090, %v1050
    %v1105 = vmul.f32 %v1093, %v1051
    %v1106 = vmul.f32 %v1098, %v1052
    %v1107 = vmul.f32 %v1101, %v1053
    %v1108 = vpack.c.bf16 %v1105, %v1104
    %v1109 = vpack.c.bf16 %v1107, %v1106
    %1110 = vmatprep.subr.bf16.mxu0 0
    %1111 = vmatpush1.bf16.msra.mxu0 0
    %1112 = vmatprep.subr.bf16.mxu0 0
    %1113 = vmatpush1.bf16.msra.mxu0 0
    %1114 = vmatprep.subr.bf16.mxu0 0
    %1115 = vmatpush1.bf16.msra.mxu0 0
    %1116 = vmatprep.subr.bf16.mxu0 0
    %1117 = vmatpush1.bf16.msra.mxu0 0
    %1118 = vmatprep.subr.bf16.mxu0 0
    %1119 = vmatpush1.bf16.msra.mxu0 0
    %1120 = vmatprep.subr.bf16.mxu0 0
    %1121 = vmatpush1.bf16.msra.mxu0 0
    %1122 = vmatprep.subr.bf16.mxu0 0
    %1123 = vmatpush1.bf16.msra.mxu0 %v1109
    %1124 = vmatprep.subr.bf16.mxu0 0
    %1125 = vmatpush1.bf16.msra.mxu0 %v1108
    %1126 = vmatprep.subr.bf16.mxu0 0
    %1127 = vmatpush2.bf16.msra.mxu0 0
    %1128 = vmatprep.subr.bf16.mxu0 0
    %1129 = vmatpush2.bf16.msra.mxu0 0
    %1130 = vmatprep.subr.bf16.mxu0 0
    %1131 = vmatpush2.bf16.msra.mxu0 0
    %1132 = vmatprep.subr.bf16.mxu0 0
    %1133 = vmatpush2.bf16.msra.mxu0 0
    %1134 = vmatprep.subr.bf16.mxu0 0
    %1135 = vmatpush2.bf16.msra.mxu0 0
    %1136 = vmatprep.subr.bf16.mxu0 0
    %1137 = vmatpush2.bf16.msra.mxu0 0
    %1138 = vmatprep.subr.bf16.mxu0 0
    %1139 = vmatpush2.bf16.msra.mxu0 0
    %1140 = vmatprep.subr.bf16.mxu0 0
    %1141 = vmatpush2.bf16.msra.mxu0 0
    %1142 = vmatprep.mubr.bf16.mxu0 0
    %1143 = vmatmul.mubr.bf16.gmra.mxu0 %v953
    %v1144 = vpop.f32.mrf.mxu0
    %v1145 = vadd.f32 0.0, %v1144
    %v1146 = vpop.f32.mrf.mxu0
    %v1147 = vpop.f32.mrf.mxu0
    %v1148 = vadd.f32 0.0, %v1147
    %v1149 = vpop.f32.mrf.mxu0
    %1150 = vdwg.mxu0
    %v1151 = vld [vmem:[#allocation17] sm:$0xff]
    %v1152 = vld [vmem:[#allocation17 + $0x8] sm:$0xf]
    %v1153 = vld [vmem:[#allocation17 + $0xc] sm:$0xff]
    %v1154 = vld [vmem:[#allocation17 + $0x14] sm:$0xf]
    %v1155 = vld [vmem:[#allocation17 + $0x18] sm:$0xff]
    %v1156 = vld [vmem:[#allocation17 + $0x20] sm:$0xf]
    %v1157 = vld [vmem:[#allocation17 + $0x24] sm:$0xff]
    %v1158 = vld [vmem:[#allocation17 + $0x2c] sm:$0xf]
    %v1159 = vld [vmem:[#allocation17 + $0x30] sm:$0xff]
    %v1160 = vld [vmem:[#allocation17 + $0x38] sm:$0xf]
    %v1161 = vld [vmem:[#allocation17 + $0x3c] sm:$0xff]
    %v1162 = vld [vmem:[#allocation17 + $0x44] sm:$0xf]
    %v1163 = vld [vmem:[#allocation17 + $0x48] sm:$0xff]
    %v1164 = vld [vmem:[#allocation17 + $0x50] sm:$0xf]
    %v1165 = vld [vmem:[#allocation17 + $0x54] sm:$0xff]
    %v1166 = vld [vmem:[#allocation17 + $0x5c] sm:$0xf]
    %v1167 = vld [vmem:[#allocation17 + $0x60] sm:$0xff]
    %v1168 = vld [vmem:[#allocation17 + $0x68] sm:$0xf]
    %v1169 = vld [vmem:[#allocation17 + $0x6c] sm:$0xff]
    %v1170 = vld [vmem:[#allocation17 + $0x74] sm:$0xf]
    %v1171 = vld [vmem:[#allocation17 + $0x78] sm:$0xff]
    %v1172 = vld [vmem:[#allocation17 + $0x80] sm:$0xf]
    %v1173 = vld [vmem:[#allocation17 + $0x84] sm:$0xff]
    %v1174 = vld [vmem:[#allocation17 + $0x8c] sm:$0xf]
    %v1175 = vld [vmem:[#allocation17 + $0x90] sm:$0xff]
    %v1176 = vld [vmem:[#allocation17 + $0x98] sm:$0xf]
    %v1177 = vld [vmem:[#allocation17 + $0x9c] sm:$0xff]
    %v1178 = vld [vmem:[#allocation17 + $0xa4] sm:$0xf]
    %v1179 = vld [vmem:[#allocation17 + $0xa8] sm:$0xff]
    %v1180 = vld [vmem:[#allocation17 + $0xb0] sm:$0xf]
    %v1181 = vld [vmem:[#allocation17 + $0xb4] sm:$0xff]
    %v1182 = vld [vmem:[#allocation17 + $0xbc] sm:$0xf]
    %v1183 = vld [vmem:[#allocation19] sm:$0x7]
    %v1184 = vld [vmem:[%s31] sm:$0xf]
    %v1185 = vld [vmem:[%s31 + $0x4] sm:$0xf]
    %v1186 = vld [vmem:[%s31 + $0x8] sm:$0xf]
    %v1187 = vld [vmem:[%s31 + $0xc] sm:$0xf]
    %v1188 = vld [vmem:[%s31 + $0x10] sm:$0xf]
    %v1189 = vld [vmem:[%s31 + $0x14] sm:$0xf]
    %v1190 = vld [vmem:[%s31 + $0x18] sm:$0xf]
    %v1191 = vld [vmem:[%s31 + $0x1c] sm:$0xf]
    %v1192 = vld [vmem:[%s31 + $0x20] sm:$0xf]
    %v1193 = vld [vmem:[%s31 + $0x24] sm:$0xf]
    %v1194 = vld [vmem:[%s31 + $0x28] sm:$0xf]
    %v1195 = vld [vmem:[%s31 + $0x2c] sm:$0xf]
    %v1196 = vld [vmem:[%s31 + $0x30] sm:$0xf]
    %v1197 = vld [vmem:[%s31 + $0x34] sm:$0xf]
    %v1198 = vld [vmem:[%s31 + $0x38] sm:$0xf]
    %v1199 = vld [vmem:[%s31 + $0x3c] sm:$0xf]
    %v1200 = vld [vmem:[#allocation20] sm:$0x1]
    %v1201 = vld [vmem:[#allocation22] sm:$0x1]
    %v1202 = vpack.c.bf16 %v1148, %v1145
    %v1204 = vlaneseq
    %v1205 = vshrl.u32 %v1204, 7
    %v1206 = vsub.s32 0, %v1205
    %v1207 = vrot.slane %v1183, %v1206
    %v1208 = vlaneseq
    %v1209 = vshrl.u32 %v1208, 7
    %v1210 = vsub.s32 1, %v1209
    %v1211 = vrot.slane %v1183, %v1210
    %v1212 = vlaneseq
    %v1213 = vshrl.u32 %v1212, 7
    %v1214 = vsub.s32 2, %v1213
    %v1215 = vrot.slane %v1183, %v1214
    %v1251 = vunpack.c.l.b16 %v1151
    %v1252 = vunpack.c.h.b16 %v1151
    %v1253 = vunpack.c.l.b16 %v1152
    %v1254 = vunpack.c.l.b16 %v1153
    %v1255 = vunpack.c.h.b16 %v1153
    %v1256 = vunpack.c.l.b16 %v1154
    %v1257 = vunpack.c.l.b16 %v1155
    %v1258 = vunpack.c.h.b16 %v1155
    %v1259 = vunpack.c.l.b16 %v1156
    %v1260 = vunpack.c.l.b16 %v1157
    %v1261 = vunpack.c.h.b16 %v1157
    %v1262 = vunpack.c.l.b16 %v1158
    %v1263 = vunpack.c.l.b16 %v1159
    %v1264 = vunpack.c.h.b16 %v1159
    %v1265 = vunpack.c.l.b16 %v1160
    %v1266 = vunpack.c.l.b16 %v1161
    %v1267 = vunpack.c.h.b16 %v1161
    %v1268 = vunpack.c.l.b16 %v1162
    %v1269 = vunpack.c.l.b16 %v1163
    %v1270 = vunpack.c.h.b16 %v1163
    %v1271 = vunpack.c.l.b16 %v1164
    %v1272 = vunpack.c.l.b16 %v1165
    %v1273 = vunpack.c.h.b16 %v1165
    %v1274 = vunpack.c.l.b16 %v1166
    %v1275 = vunpack.c.l.b16 %v1167
    %v1276 = vunpack.c.h.b16 %v1167
    %v1277 = vunpack.c.l.b16 %v1168
    %v1278 = vunpack.c.l.b16 %v1169
    %v1279 = vunpack.c.h.b16 %v1169
    %v1280 = vunpack.c.l.b16 %v1170
    %v1281 = vunpack.c.l.b16 %v1171
    %v1282 = vunpack.c.h.b16 %v1171
    %v1283 = vunpack.c.l.b16 %v1172
    %v1284 = vunpack.c.l.b16 %v1173
    %v1285 = vunpack.c.h.b16 %v1173
    %v1286 = vunpack.c.l.b16 %v1174
    %v1287 = vunpack.c.l.b16 %v1175
    %v1288 = vunpack.c.h.b16 %v1175
    %v1289 = vunpack.c.l.b16 %v1176
    %v1290 = vunpack.c.l.b16 %v1177
    %v1291 = vunpack.c.h.b16 %v1177
    %v1292 = vunpack.c.l.b16 %v1178
    %v1293 = vunpack.c.l.b16 %v1179
    %v1294 = vunpack.c.h.b16 %v1179
    %v1295 = vunpack.c.l.b16 %v1180
    %v1296 = vunpack.c.l.b16 %v1181
    %v1297 = vunpack.c.h.b16 %v1181
    %v1298 = vunpack.c.l.b16 %v1182
    %v1299 = vpack.c.b16 %v1254, %v1251
    %v1300 = vpack.c.b16 %v1255, %v1252
    %v1301 = vpack.c.b16 %v1256, %v1253
    %v1302 = vpack.c.b16 %v1260, %v1257
    %v1303 = vpack.c.b16 %v1261, %v1258
    %v1304 = vpack.c.b16 %v1262, %v1259
    %v1305 = vpack.c.b16 %v1266, %v1263
    %v1306 = vpack.c.b16 %v1267, %v1264
    %v1307 = vpack.c.b16 %v1268, %v1265
    %v1308 = vpack.c.b16 %v1272, %v1269
    %v1309 = vpack.c.b16 %v1273, %v1270
    %v1310 = vpack.c.b16 %v1274, %v1271
    %v1311 = vpack.c.b16 %v1278, %v1275
    %v1312 = vpack.c.b16 %v1279, %v1276
    %v1313 = vpack.c.b16 %v1280, %v1277
    %v1314 = vpack.c.b16 %v1284, %v1281
    %v1315 = vpack.c.b16 %v1285, %v1282
    %v1316 = vpack.c.b16 %v1286, %v1283
    %v1317 = vpack.c.b16 %v1290, %v1287
    %v1318 = vpack.c.b16 %v1291, %v1288
    %v1319 = vpack.c.b16 %v1292, %v1289
    %v1320 = vpack.c.b16 %v1296, %v1293
    %v1321 = vpack.c.b16 %v1297, %v1294
    %v1322 = vpack.c.b16 %v1298, %v1295
    %1347 = vmatprep.subr.bf16.mxu0 %v1321
    %1348 = vmatpush1.bf16.msra.mxu0 %v1320
    %1349 = vmatprep.subr.bf16.mxu0 %v1318
    %1350 = vmatpush1.bf16.msra.mxu0 %v1317
    %1351 = vmatprep.subr.bf16.mxu0 %v1315
    %1352 = vmatpush1.bf16.msra.mxu0 %v1314
    %1353 = vmatprep.subr.bf16.mxu0 %v1312
    %1354 = vmatpush1.bf16.msra.mxu0 %v1311
    %1355 = vmatprep.subr.bf16.mxu0 %v1309
    %1356 = vmatpush1.bf16.msra.mxu0 %v1308
    %1357 = vmatprep.subr.bf16.mxu0 %v1306
    %1358 = vmatpush1.bf16.msra.mxu0 %v1305
    %1359 = vmatprep.subr.bf16.mxu0 %v1303
    %1360 = vmatpush1.bf16.msra.mxu0 %v1302
    %1361 = vmatprep.subr.bf16.mxu0 %v1300
    %1362 = vmatpush1.bf16.msra.mxu0 %v1299
    %1363 = vmatprep.subr.bf16.mxu0 0
    %1364 = vmatpush2.bf16.msra.mxu0 0
    %1365 = vmatprep.subr.bf16.mxu0 0
    %1366 = vmatpush2.bf16.msra.mxu0 0
    %1367 = vmatprep.subr.bf16.mxu0 0
    %1368 = vmatpush2.bf16.msra.mxu0 0
    %1369 = vmatprep.subr.bf16.mxu0 0
    %1370 = vmatpush2.bf16.msra.mxu0 0
    %1371 = vmatprep.subr.bf16.mxu0 0
    %1372 = vmatpush2.bf16.msra.mxu0 0
    %1373 = vmatprep.subr.bf16.mxu0 0
    %1374 = vmatpush2.bf16.msra.mxu0 0
    %1375 = vmatprep.subr.bf16.mxu0 0
    %1376 = vmatpush2.bf16.msra.mxu0 0
    %1377 = vmatprep.subr.bf16.mxu0 0
    %1378 = vmatpush2.bf16.msra.mxu0 0
    %1379 = vmatprep.mubr.bf16.mxu0 0
    %1380 = vmatmul.mubr.bf16.gmra.mxu0 %v1202
    %v1381 = vpop.f32.mrf.mxu0
    %v1382 = vadd.f32 %v1207, %v1381
    %v1383 = vpop.f32.mrf.mxu0
    %v1384 = vadd.f32 %v1211, %v1383
    %v1385 = vpop.f32.mrf.mxu0
    %v1386 = vadd.f32 %v1207, %v1385
    %v1387 = vpop.f32.mrf.mxu0
    %v1388 = vadd.f32 %v1211, %v1387
    %1389 = vdwg.mxu0
    %1390 = vmatprep.subr.bf16.mxu0 0
    %1391 = vmatpush1.bf16.msra.mxu0 %v1322
    %1392 = vmatprep.subr.bf16.mxu0 0
    %1393 = vmatpush1.bf16.msra.mxu0 %v1319
    %1394 = vmatprep.subr.bf16.mxu0 0
    %1395 = vmatpush1.bf16.msra.mxu0 %v1316
    %1396 = vmatprep.subr.bf16.mxu0 0
    %1397 = vmatpush1.bf16.msra.mxu0 %v1313
    %1398 = vmatprep.subr.bf16.mxu0 0
    %1399 = vmatpush1.bf16.msra.mxu0 %v1310
    %1400 = vmatprep.subr.bf16.mxu0 0
    %1401 = vmatpush1.bf16.msra.mxu0 %v1307
    %1402 = vmatprep.subr.bf16.mxu0 0
    %1403 = vmatpush1.bf16.msra.mxu0 %v1304
    %1404 = vmatprep.subr.bf16.mxu0 0
    %1405 = vmatpush1.bf16.msra.mxu0 %v1301
    %1406 = vmatprep.subr.bf16.mxu0 0
    %1407 = vmatpush2.bf16.msra.mxu0 0
    %1408 = vmatprep.subr.bf16.mxu0 0
    %1409 = vmatpush2.bf16.msra.mxu0 0
    %1410 = vmatprep.subr.bf16.mxu0 0
    %1411 = vmatpush2.bf16.msra.mxu0 0
    %1412 = vmatprep.subr.bf16.mxu0 0
    %1413 = vmatpush2.bf16.msra.mxu0 0
    %1414 = vmatprep.subr.bf16.mxu0 0
    %1415 = vmatpush2.bf16.msra.mxu0 0
    %1416 = vmatprep.subr.bf16.mxu0 0
    %1417 = vmatpush2.bf16.msra.mxu0 0
    %1418 = vmatprep.subr.bf16.mxu0 0
    %1419 = vmatpush2.bf16.msra.mxu0 0
    %1420 = vmatprep.subr.bf16.mxu0 0
    %1421 = vmatpush2.bf16.msra.mxu0 0
    %1422 = vmatprep.mubr.bf16.mxu0 0
    %1423 = vmatmul.mubr.bf16.gmra.mxu0 %v1202
    %v1424 = vpop.f32.mrf.mxu0
    %v1425 = vadd.f32 %v1215, %v1424
    %v1426 = vpop.f32.mrf.mxu0
    %v1427 = vpop.f32.mrf.mxu0
    %v1428 = vadd.f32 %v1215, %v1427
    %v1429 = vpop.f32.mrf.mxu0
    %1430 = vdwg.mxu0
    %v1431 = vpack.c.bf16 %v808, %v807
    %v1432 = vpack.c.bf16 %v810, %v809
    %v1434 = vlaneseq
    %v1435 = vshrl.u32 %v1434, 7
    %v1436 = vsub.s32 0, %v1435
    %v1437 = vrot.slane %v1200, %v1436
    %v1455 = vunpack.c.l.b16 %v1184
    %v1456 = vunpack.c.l.b16 %v1185
    %v1457 = vunpack.c.l.b16 %v1186
    %v1458 = vunpack.c.l.b16 %v1187
    %v1459 = vunpack.c.l.b16 %v1188
    %v1460 = vunpack.c.l.b16 %v1189
    %v1461 = vunpack.c.l.b16 %v1190
    %v1462 = vunpack.c.l.b16 %v1191
    %v1463 = vunpack.c.l.b16 %v1192
    %v1464 = vunpack.c.l.b16 %v1193
    %v1465 = vunpack.c.l.b16 %v1194
    %v1466 = vunpack.c.l.b16 %v1195
    %v1467 = vunpack.c.l.b16 %v1196
    %v1468 = vunpack.c.l.b16 %v1197
    %v1469 = vunpack.c.l.b16 %v1198
    %v1470 = vunpack.c.l.b16 %v1199
    %v1471 = vpack.c.b16 %v1456, %v1455
    %v1472 = vpack.c.b16 %v1458, %v1457
    %v1473 = vpack.c.b16 %v1460, %v1459
    %v1474 = vpack.c.b16 %v1462, %v1461
    %v1475 = vpack.c.b16 %v1464, %v1463
    %v1476 = vpack.c.b16 %v1466, %v1465
    %v1477 = vpack.c.b16 %v1468, %v1467
    %v1478 = vpack.c.b16 %v1470, %v1469
    %1487 = vmatprep.subr.bf16.mxu0 0
    %1488 = vmatpush1.bf16.msra.mxu0 %v1478
    %1489 = vmatprep.subr.bf16.mxu0 0
    %1490 = vmatpush1.bf16.msra.mxu0 %v1477
    %1491 = vmatprep.subr.bf16.mxu0 0
    %1492 = vmatpush1.bf16.msra.mxu0 %v1476
    %1493 = vmatprep.subr.bf16.mxu0 0
    %1494 = vmatpush1.bf16.msra.mxu0 %v1475
    %1495 = vmatprep.subr.bf16.mxu0 0
    %1496 = vmatpush1.bf16.msra.mxu0 %v1474
    %1497 = vmatprep.subr.bf16.mxu0 0
    %1498 = vmatpush1.bf16.msra.mxu0 %v1473
    %1499 = vmatprep.subr.bf16.mxu0 0
    %1500 = vmatpush1.bf16.msra.mxu0 %v1472
    %1501 = vmatprep.subr.bf16.mxu0 0
    %1502 = vmatpush1.bf16.msra.mxu0 %v1471
    %1503 = vmatprep.subr.bf16.mxu0 0
    %1504 = vmatpush2.bf16.msra.mxu0 0
    %1505 = vmatprep.subr.bf16.mxu0 0
    %1506 = vmatpush2.bf16.msra.mxu0 0
    %1507 = vmatprep.subr.bf16.mxu0 0
    %1508 = vmatpush2.bf16.msra.mxu0 0
    %1509 = vmatprep.subr.bf16.mxu0 0
    %1510 = vmatpush2.bf16.msra.mxu0 0
    %1511 = vmatprep.subr.bf16.mxu0 0
    %1512 = vmatpush2.bf16.msra.mxu0 0
    %1513 = vmatprep.subr.bf16.mxu0 0
    %1514 = vmatpush2.bf16.msra.mxu0 0
    %1515 = vmatprep.subr.bf16.mxu0 0
    %1516 = vmatpush2.bf16.msra.mxu0 0
    %1517 = vmatprep.subr.bf16.mxu0 0
    %1518 = vmatpush2.bf16.msra.mxu0 0
    %1519 = vmatprep.mubr.bf16.mxu0 0
    %1520 = vmatmul.mubr.bf16.gmra.mxu0 %v1431
    %v1521 = vpop.f32.mrf.mxu0
    %v1522 = vadd.f32 %v1437, %v1521
    %v1523 = vpop.f32.mrf.mxu0
    %v1524 = vpop.f32.mrf.mxu0
    %v1525 = vadd.f32 %v1437, %v1524
    %v1526 = vpop.f32.mrf.mxu0
    %1527 = vmatprep.mubr.bf16.mxu0 0
    %1528 = vmatmul.mubr.bf16.gmra.mxu0 %v1432
    %v1529 = vpop.f32.mrf.mxu0
    %v1530 = vadd.f32 %v1437, %v1529
    %v1531 = vpop.f32.mrf.mxu0
    %v1532 = vpop.f32.mrf.mxu0
    %v1533 = vadd.f32 %v1437, %v1532
    %v1534 = vpop.f32.mrf.mxu0
    %1535 = vdwg.mxu0
    %v1536 = vpack.c.bf16 %v1386, %v1382
    %v1537 = vpack.c.bf16 %v1388, %v1384
    %1538 = vmatprep.subr.bf16.mxu0 0
    %1539 = vmatpush1.bf16.msra.mxu0 0
    %1540 = vmatprep.subr.bf16.mxu0 0
    %1541 = vmatpush1.bf16.msra.mxu0 0
    %1542 = vmatprep.subr.bf16.mxu0 0
    %1543 = vmatpush1.bf16.msra.mxu0 0
    %1544 = vmatprep.subr.bf16.mxu0 0
    %1545 = vmatpush1.bf16.msra.mxu0 0
    %1546 = vmatprep.subr.bf16.mxu0 0
    %1547 = vmatpush1.bf16.msra.mxu0 0
    %1548 = vmatprep.subr.bf16.mxu0 0
    %1549 = vmatpush1.bf16.msra.mxu0 0
    %1550 = vmatprep.subr.bf16.mxu0 0
    %1551 = vmatpush1.bf16.msra.mxu0 0
    %1552 = vmatprep.subr.bf16.mxu0 0
    %1553 = vmatpush1.bf16.msra.mxu0 %v1537
    %1554 = vmatprep.subr.bf16.mxu0 0
    %1555 = vmatpush2.bf16.msra.mxu0 0
    %1556 = vmatprep.subr.bf16.mxu0 0
    %1557 = vmatpush2.bf16.msra.mxu0 0
    %1558 = vmatprep.subr.bf16.mxu0 0
    %1559 = vmatpush2.bf16.msra.mxu0 0
    %1560 = vmatprep.subr.bf16.mxu0 0
    %1561 = vmatpush2.bf16.msra.mxu0 0
    %1562 = vmatprep.subr.bf16.mxu0 0
    %1563 = vmatpush2.bf16.msra.mxu0 0
    %1564 = vmatprep.subr.bf16.mxu0 0
    %1565 = vmatpush2.bf16.msra.mxu0 0
    %1566 = vmatprep.subr.bf16.mxu0 0
    %1567 = vmatpush2.bf16.msra.mxu0 0
    %1568 = vmatprep.subr.bf16.mxu0 0
    %1569 = vmatpush2.bf16.msra.mxu0 0
    %1570 = vmatprep.mubr.bf16.mxu0 0
    %1571 = vmatmul.mubr.bf16.gmra.mxu0 %v676
    %v1572 = vpop.f32.mrf.mxu0
    %v1573 = vadd.f32 0.0, %v1572
    %v1574 = vpop.f32.mrf.mxu0
    %v1575 = vpop.f32.mrf.mxu0
    %v1576 = vadd.f32 0.0, %v1575
    %v1577 = vpop.f32.mrf.mxu0
    %1578 = vmatprep.mubr.bf16.mxu0 0
    %1579 = vmatmul.mubr.bf16.gmra.mxu0 %v679
    %v1580 = vpop.f32.mrf.mxu0
    %v1581 = vadd.f32 0.0, %v1580
    %v1582 = vpop.f32.mrf.mxu0
    %v1583 = vpop.f32.mrf.mxu0
    %v1584 = vadd.f32 0.0, %v1583
    %v1585 = vpop.f32.mrf.mxu0
    %1586 = vdwg.mxu0
    %1587 = vmatprep.subr.bf16.mxu0 0
    %1588 = vmatpush1.bf16.msra.mxu0 0
    %1589 = vmatprep.subr.bf16.mxu0 0
    %1590 = vmatpush1.bf16.msra.mxu0 0
    %1591 = vmatprep.subr.bf16.mxu0 0
    %1592 = vmatpush1.bf16.msra.mxu0 0
    %1593 = vmatprep.subr.bf16.mxu0 0
    %1594 = vmatpush1.bf16.msra.mxu0 0
    %1595 = vmatprep.subr.bf16.mxu0 0
    %1596 = vmatpush1.bf16.msra.mxu0 0
    %1597 = vmatprep.subr.bf16.mxu0 0
    %1598 = vmatpush1.bf16.msra.mxu0 0
    %1599 = vmatprep.subr.bf16.mxu0 0
    %1600 = vmatpush1.bf16.msra.mxu0 0
    %1601 = vmatprep.subr.bf16.mxu0 0
    %1602 = vmatpush1.bf16.msra.mxu0 %v1536
    %1603 = vmatprep.subr.bf16.mxu0 0
    %1604 = vmatpush2.bf16.msra.mxu0 0
    %1605 = vmatprep.subr.bf16.mxu0 0
    %1606 = vmatpush2.bf16.msra.mxu0 0
    %1607 = vmatprep.subr.bf16.mxu0 0
    %1608 = vmatpush2.bf16.msra.mxu0 0
    %1609 = vmatprep.subr.bf16.mxu0 0
    %1610 = vmatpush2.bf16.msra.mxu0 0
    %1611 = vmatprep.subr.bf16.mxu0 0
    %1612 = vmatpush2.bf16.msra.mxu0 0
    %1613 = vmatprep.subr.bf16.mxu0 0
    %1614 = vmatpush2.bf16.msra.mxu0 0
    %1615 = vmatprep.subr.bf16.mxu0 0
    %1616 = vmatpush2.bf16.msra.mxu0 0
    %1617 = vmatprep.subr.bf16.mxu0 0
    %1618 = vmatpush2.bf16.msra.mxu0 0
    %1619 = vmatprep.mubr.bf16.mxu0 0
    %1620 = vmatmul.mubr.bf16.gmra.mxu0 %v741
    %v1621 = vpop.f32.mrf.mxu0
    %v1622 = vadd.f32 %v1573, %v1621
    %v1623 = vpop.f32.mrf.mxu0
    %v1624 = vpop.f32.mrf.mxu0
    %v1625 = vadd.f32 %v1576, %v1624
    %v1626 = vpop.f32.mrf.mxu0
    %1627 = vmatprep.mubr.bf16.mxu0 0
    %1628 = vmatmul.mubr.bf16.gmra.mxu0 %v744
    %v1629 = vpop.f32.mrf.mxu0
    %v1630 = vadd.f32 %v1581, %v1629
    %v1631 = vpop.f32.mrf.mxu0
    %v1632 = vpop.f32.mrf.mxu0
    %v1633 = vadd.f32 %v1584, %v1632
    %v1634 = vpop.f32.mrf.mxu0
    %1635 = vdwg.mxu0
    %v1636 = vadd.f32 %v1622, %v1522
    %v1637 = vadd.f32 %v1625, %v1525
    %v1638 = vadd.f32 %v1630, %v1530
    %v1639 = vadd.f32 %v1633, %v1533
    %vm1640 = vcmp.gt.f32.partialorder %v1636, 0.0
    %vm1641 = vcmp.gt.f32.partialorder %v1637, 0.0
    %vm1642 = vcmp.gt.f32.partialorder %v1638, 0.0
    %vm1643 = vcmp.gt.f32.partialorder %v1639, 0.0
    %v1644 = vmul.f32 %v1636, 0.01
    %v1645 = vmul.f32 %v1637, 0.01
    %v1646 = vmul.f32 %v1638, 0.01
    %v1647 = vmul.f32 %v1639, 0.01
    %v1648 = vsel %vm1640, %v1636, %v1644
    %v1649 = vsel %vm1641, %v1637, %v1645
    %v1650 = vsel %vm1642, %v1638, %v1646
    %v1651 = vsel %vm1643, %v1639, %v1647
    %v1653 = vlaneseq
    %v1654 = vshrl.u32 %v1653, 7
    %v1655 = vsub.s32 0, %v1654
    %v1656 = vrot.slane %v1201, %v1655
    %v1658 = vmul.f32 %v1648, %v1656
    %v1659 = vmul.f32 %v1649, %v1656
    %v1660 = vmul.f32 %v1650, %v1656
    %v1661 = vmul.f32 %v1651, %v1656
    %v1662 = vpack.c.bf16 %v1659, %v1658
    %v1663 = vpack.c.bf16 %v1661, %v1660
    %1664 = vmatprep.subr.bf16.mxu0 0
    %1665 = vmatpush1.bf16.msra.mxu0 %v862
    %1666 = vmatprep.subr.bf16.mxu0 0
    %1667 = vmatpush1.bf16.msra.mxu0 %v861
    %1668 = vmatprep.subr.bf16.mxu0 0
    %1669 = vmatpush1.bf16.msra.mxu0 %v860
    %1670 = vmatprep.subr.bf16.mxu0 0
    %1671 = vmatpush1.bf16.msra.mxu0 %v859
    %1672 = vmatprep.subr.bf16.mxu0 0
    %1673 = vmatpush1.bf16.msra.mxu0 %v858
    %1674 = vmatprep.subr.bf16.mxu0 0
    %1675 = vmatpush1.bf16.msra.mxu0 %v857
    %1676 = vmatprep.subr.bf16.mxu0 0
    %1677 = vmatpush1.bf16.msra.mxu0 %v856
    %1678 = vmatprep.subr.bf16.mxu0 0
    %1679 = vmatpush1.bf16.msra.mxu0 %v855
    %1680 = vmatprep.subr.bf16.mxu0 0
    %1681 = vmatpush2.bf16.msra.mxu0 0
    %1682 = vmatprep.subr.bf16.mxu0 0
    %1683 = vmatpush2.bf16.msra.mxu0 0
    %1684 = vmatprep.subr.bf16.mxu0 0
    %1685 = vmatpush2.bf16.msra.mxu0 0
    %1686 = vmatprep.subr.bf16.mxu0 0
    %1687 = vmatpush2.bf16.msra.mxu0 0
    %1688 = vmatprep.subr.bf16.mxu0 0
    %1689 = vmatpush2.bf16.msra.mxu0 0
    %1690 = vmatprep.subr.bf16.mxu0 0
    %1691 = vmatpush2.bf16.msra.mxu0 0
    %1692 = vmatprep.subr.bf16.mxu0 0
    %1693 = vmatpush2.bf16.msra.mxu0 0
    %1694 = vmatprep.subr.bf16.mxu0 0
    %1695 = vmatpush2.bf16.msra.mxu0 0
    %1696 = vmatprep.mubr.bf16.mxu0 0
    %1697 = vmatmul.mubr.bf16.gmra.mxu0 %v1662
    %v1698 = vpop.f32.mrf.mxu0
    %v1699 = vadd.f32 0.0, %v1698
    %v1700 = vpop.f32.mrf.mxu0
    %v1701 = vpop.f32.mrf.mxu0
    %v1702 = vadd.f32 0.0, %v1701
    %v1703 = vpop.f32.mrf.mxu0
    %1704 = vmatprep.mubr.bf16.mxu0 0
    %1705 = vmatmul.mubr.bf16.gmra.mxu0 %v1663
    %v1706 = vpop.f32.mrf.mxu0
    %v1707 = vadd.f32 0.0, %v1706
    %v1708 = vpop.f32.mrf.mxu0
    %v1709 = vpop.f32.mrf.mxu0
    %v1710 = vadd.f32 0.0, %v1709
    %v1711 = vpop.f32.mrf.mxu0
    %1712 = vdwg.mxu0
    %v1713 = vmax.f32 %v1699, %v1702
    %v1714 = vmax.f32 %v1707, %v1710
    %v1715 = vmax.f32 %v1713, %v1714
    %1716 = vmax.xlane.f32.xlu0 %v1715
    %v1717 = vpop.xlane.xlu0 %1716
    %v1718 = vrot.slane %v1717, 4
    %v1719 = vmax.f32 %v1717, %v1718
    %v1720 = vrot.slane %v1719, 2
    %v1721 = vmax.f32 %v1719, %v1720
    %v1722 = vrot.slane %v1721, 1
    %v1723 = vmax.f32 %v1721, %v1722
    %s1724 = vtos %v1723
    %v1725 = vstv %s1724
    %v1726 = vsub.f32 %v1699, %v1725
    %v1727 = vsub.f32 %v1702, %v1725
    %v1728 = vsub.f32 %v1707, %v1725
    %v1729 = vsub.f32 %v1710, %v1725
    %v1730 = vmul.f32 %v1726, 1.442695
    %v1731 = vpow.pop %v1730
    %v1732 = vmul.f32 %v1727, 1.442695
    %v1733 = vpow.pop %v1732
    %v1734 = vmul.f32 %v1728, 1.442695
    %v1735 = vpow.pop %v1734
    %v1736 = vmul.f32 %v1729, 1.442695
    %v1737 = vpow.pop %v1736
    %v1738 = vpack.c.bf16 %v1733, %v1731
    %v1739 = vpack.c.bf16 %v1737, %v1735
    %1740 = vmatprep.subr.bf16.mxu0 0
    %1741 = vmatpush1.bf16.msra.mxu0 0
    %1742 = vmatprep.subr.bf16.mxu0 0
    %1743 = vmatpush1.bf16.msra.mxu0 0
    %1744 = vmatprep.subr.bf16.mxu0 0
    %1745 = vmatpush1.bf16.msra.mxu0 0
    %1746 = vmatprep.subr.bf16.mxu0 0
    %1747 = vmatpush1.bf16.msra.mxu0 0
    %1748 = vmatprep.subr.bf16.mxu0 0
    %1749 = vmatpush1.bf16.msra.mxu0 0
    %1750 = vmatprep.subr.bf16.mxu0 0
    %1751 = vmatpush1.bf16.msra.mxu0 0
    %1752 = vmatprep.subr.bf16.mxu0 0
    %1753 = vmatpush1.bf16.msra.mxu0 %v1739
    %1754 = vmatprep.subr.bf16.mxu0 0
    %1755 = vmatpush1.bf16.msra.mxu0 %v1738
    %1756 = vmatprep.subr.bf16.mxu0 0
    %1757 = vmatpush2.bf16.msra.mxu0 0
    %1758 = vmatprep.subr.bf16.mxu0 0
    %1759 = vmatpush2.bf16.msra.mxu0 0
    %1760 = vmatprep.subr.bf16.mxu0 0
    %1761 = vmatpush2.bf16.msra.mxu0 0
    %1762 = vmatprep.subr.bf16.mxu0 0
    %1763 = vmatpush2.bf16.msra.mxu0 0
    %1764 = vmatprep.subr.bf16.mxu0 0
    %1765 = vmatpush2.bf16.msra.mxu0 0
    %1766 = vmatprep.subr.bf16.mxu0 0
    %1767 = vmatpush2.bf16.msra.mxu0 0
    %1768 = vmatprep.subr.bf16.mxu0 0
    %1769 = vmatpush2.bf16.msra.mxu0 0
    %1770 = vmatprep.subr.bf16.mxu0 0
    %1771 = vmatpush2.bf16.msra.mxu0 0
    %1772 = vmatprep.mubr.bf16.mxu0 0
    %1773 = vmatmul.mubr.bf16.gmra.mxu0 %v953
    %v1774 = vpop.f32.mrf.mxu0
    %v1775 = vadd.f32 0.0, %v1774
    %v1776 = vpop.f32.mrf.mxu0
    %v1777 = vpop.f32.mrf.mxu0
    %v1778 = vadd.f32 0.0, %v1777
    %v1779 = vpop.f32.mrf.mxu0
    %1780 = vdwg.mxu0
    %v1781 = vpack.c.bf16 %v1778, %v1775
    %1782 = vmatprep.subr.bf16.mxu0 0
    %1783 = vmatpush1.bf16.msra.mxu0 0
    %1784 = vmatprep.subr.bf16.mxu0 0
    %1785 = vmatpush1.bf16.msra.mxu0 0
    %1786 = vmatprep.subr.bf16.mxu0 0
    %1787 = vmatpush1.bf16.msra.mxu0 0
    %1788 = vmatprep.subr.bf16.mxu0 0
    %1789 = vmatpush1.bf16.msra.mxu0 0
    %1790 = vmatprep.subr.bf16.mxu0 0
    %1791 = vmatpush1.bf16.msra.mxu0 0
    %1792 = vmatprep.subr.bf16.mxu0 0
    %1793 = vmatpush1.bf16.msra.mxu0 0
    %1794 = vmatprep.subr.bf16.mxu0 0
    %1795 = vmatpush1.bf16.msra.mxu0 0
    %1796 = vmatprep.subr.bf16.mxu0 0
    %1797 = vmatpush1.bf16.msra.mxu0 %v1781
    %1798 = vmatprep.subr.bf16.mxu0 0
    %1799 = vmatpush2.bf16.msra.mxu0 0
    %1800 = vmatprep.subr.bf16.mxu0 0
    %1801 = vmatpush2.bf16.msra.mxu0 0
    %1802 = vmatprep.subr.bf16.mxu0 0
    %1803 = vmatpush2.bf16.msra.mxu0 0
    %1804 = vmatprep.subr.bf16.mxu0 0
    %1805 = vmatpush2.bf16.msra.mxu0 0
    %1806 = vmatprep.subr.bf16.mxu0 0
    %1807 = vmatpush2.bf16.msra.mxu0 0
    %1808 = vmatprep.subr.bf16.mxu0 0
    %1809 = vmatpush2.bf16.msra.mxu0 0
    %1810 = vmatprep.subr.bf16.mxu0 0
    %1811 = vmatpush2.bf16.msra.mxu0 0
    %1812 = vmatprep.subr.bf16.mxu0 0
    %1813 = vmatpush2.bf16.msra.mxu0 0
    %1814 = vmatprep.mubr.bf16.mxu0 0
    %1815 = vmatmul.mubr.bf16.gmra.mxu0 %v676
    %v1816 = vpop.f32.mrf.mxu0
    %v1817 = vadd.f32 0.0, %v1816
    %v1818 = vpop.f32.mrf.mxu0
    %v1819 = vpop.f32.mrf.mxu0
    %v1820 = vadd.f32 0.0, %v1819
    %v1821 = vpop.f32.mrf.mxu0
    %1822 = vmatprep.mubr.bf16.mxu0 0
    %1823 = vmatmul.mubr.bf16.gmra.mxu0 %v679
    %v1824 = vpop.f32.mrf.mxu0
    %v1825 = vadd.f32 0.0, %v1824
    %v1826 = vpop.f32.mrf.mxu0
    %v1827 = vpop.f32.mrf.mxu0
    %v1828 = vadd.f32 0.0, %v1827
    %v1829 = vpop.f32.mrf.mxu0
    %1830 = vdwg.mxu0
    %v1831 = vrcp.pop %v1817
    %v1832 = vrcp.pop %v1820
    %v1833 = vrcp.pop %v1825
    %v1834 = vrcp.pop %v1828
    %v1835 = vmul.f32 %v1731, %v1831
    %v1836 = vmul.f32 %v1733, %v1832
    %v1837 = vmul.f32 %v1735, %v1833
    %v1838 = vmul.f32 %v1737, %v1834
    %v1839 = vpack.c.bf16 %v1428, %v1425
    %1840 = vmatprep.subr.bf16.mxu0 0
    %1841 = vmatpush1.bf16.msra.mxu0 0
    %1842 = vmatprep.subr.bf16.mxu0 0
    %1843 = vmatpush1.bf16.msra.mxu0 0
    %1844 = vmatprep.subr.bf16.mxu0 0
    %1845 = vmatpush1.bf16.msra.mxu0 0
    %1846 = vmatprep.subr.bf16.mxu0 0
    %1847 = vmatpush1.bf16.msra.mxu0 0
    %1848 = vmatprep.subr.bf16.mxu0 0
    %1849 = vmatpush1.bf16.msra.mxu0 0
    %1850 = vmatprep.subr.bf16.mxu0 0
    %1851 = vmatpush1.bf16.msra.mxu0 0
    %1852 = vmatprep.subr.bf16.mxu0 0
    %1853 = vmatpush1.bf16.msra.mxu0 0
    %1854 = vmatprep.subr.bf16.mxu0 0
    %1855 = vmatpush1.bf16.msra.mxu0 %v1839
    %1856 = vmatprep.subr.bf16.mxu0 0
    %1857 = vmatpush2.bf16.msra.mxu0 0
    %1858 = vmatprep.subr.bf16.mxu0 0
    %1859 = vmatpush2.bf16.msra.mxu0 0
    %1860 = vmatprep.subr.bf16.mxu0 0
    %1861 = vmatpush2.bf16.msra.mxu0 0
    %1862 = vmatprep.subr.bf16.mxu0 0
    %1863 = vmatpush2.bf16.msra.mxu0 0
    %1864 = vmatprep.subr.bf16.mxu0 0
    %1865 = vmatpush2.bf16.msra.mxu0 0
    %1866 = vmatprep.subr.bf16.mxu0 0
    %1867 = vmatpush2.bf16.msra.mxu0 0
    %1868 = vmatprep.subr.bf16.mxu0 0
    %1869 = vmatpush2.bf16.msra.mxu0 0
    %1870 = vmatprep.subr.bf16.mxu0 0
    %1871 = vmatpush2.bf16.msra.mxu0 0
    %1872 = vmatprep.mubr.bf16.mxu0 0
    %1873 = vmatmul.mubr.bf16.gmra.mxu0 %v741
    %v1874 = vpop.f32.mrf.mxu0
    %v1875 = vadd.f32 0.0, %v1874
    %v1876 = vpop.f32.mrf.mxu0
    %v1877 = vpop.f32.mrf.mxu0
    %v1878 = vadd.f32 0.0, %v1877
    %v1879 = vpop.f32.mrf.mxu0
    %1880 = vmatprep.mubr.bf16.mxu0 0
    %1881 = vmatmul.mubr.bf16.gmra.mxu0 %v744
    %v1882 = vpop.f32.mrf.mxu0
    %v1883 = vadd.f32 0.0, %v1882
    %v1884 = vpop.f32.mrf.mxu0
    %v1885 = vpop.f32.mrf.mxu0
    %v1886 = vadd.f32 0.0, %v1885
    %v1887 = vpop.f32.mrf.mxu0
    %1888 = vdwg.mxu0
    %v1889 = vmul.f32 %v1875, %v1835
    %v1890 = vmul.f32 %v1878, %v1836
    %v1891 = vmul.f32 %v1883, %v1837
    %v1892 = vmul.f32 %v1886, %v1838
    %v1893 = vpack.c.bf16 %v1890, %v1889
    %v1894 = vpack.c.bf16 %v1892, %v1891
    %1895 = vmatprep.subr.bf16.mxu0 0
    %1896 = vmatpush1.bf16.msra.mxu0 0
    %1897 = vmatprep.subr.bf16.mxu0 0
    %1898 = vmatpush1.bf16.msra.mxu0 0
    %1899 = vmatprep.subr.bf16.mxu0 0
    %1900 = vmatpush1.bf16.msra.mxu0 0
    %1901 = vmatprep.subr.bf16.mxu0 0
    %1902 = vmatpush1.bf16.msra.mxu0 0
    %1903 = vmatprep.subr.bf16.mxu0 0
    %1904 = vmatpush1.bf16.msra.mxu0 0
    %1905 = vmatprep.subr.bf16.mxu0 0
    %1906 = vmatpush1.bf16.msra.mxu0 0
    %1907 = vmatprep.subr.bf16.mxu0 0
    %1908 = vmatpush1.bf16.msra.mxu0 %v1894
    %1909 = vmatprep.subr.bf16.mxu0 0
    %1910 = vmatpush1.bf16.msra.mxu0 %v1893
    %1911 = vmatprep.subr.bf16.mxu0 0
    %1912 = vmatpush2.bf16.msra.mxu0 0
    %1913 = vmatprep.subr.bf16.mxu0 0
    %1914 = vmatpush2.bf16.msra.mxu0 0
    %1915 = vmatprep.subr.bf16.mxu0 0
    %1916 = vmatpush2.bf16.msra.mxu0 0
    %1917 = vmatprep.subr.bf16.mxu0 0
    %1918 = vmatpush2.bf16.msra.mxu0 0
    %1919 = vmatprep.subr.bf16.mxu0 0
    %1920 = vmatpush2.bf16.msra.mxu0 0
    %1921 = vmatprep.subr.bf16.mxu0 0
    %1922 = vmatpush2.bf16.msra.mxu0 0
    %1923 = vmatprep.subr.bf16.mxu0 0
    %1924 = vmatpush2.bf16.msra.mxu0 0
    %1925 = vmatprep.subr.bf16.mxu0 0
    %1926 = vmatpush2.bf16.msra.mxu0 0
    %1927 = vmatprep.mubr.bf16.mxu0 0
    %1928 = vmatmul.mubr.bf16.gmra.mxu0 %v953
    %v1929 = vpop.f32.mrf.mxu0
    %v1930 = vadd.f32 0.0, %v1929
    %v1931 = vpop.f32.mrf.mxu0
    %v1932 = vpop.f32.mrf.mxu0
    %v1933 = vadd.f32 0.0, %v1932
    %v1934 = vpop.f32.mrf.mxu0
    %1935 = vdwg.mxu0
    %v1936 = vpack.c.bf16 %v1933, %v1930
    %v1937 = vld [vmem:[#allocation23] sm:$0xf]
    %v1938 = vld [vmem:[#allocation23 + $0x4] sm:$0xf]
    %v1939 = vld [vmem:[#allocation23 + $0x8] sm:$0xf]
    %v1940 = vld [vmem:[#allocation23 + $0xc] sm:$0xf]
    %v1941 = vld [vmem:[#allocation23 + $0x10] sm:$0xf]
    %v1942 = vld [vmem:[#allocation23 + $0x14] sm:$0xf]
    %v1943 = vld [vmem:[#allocation23 + $0x18] sm:$0xf]
    %v1944 = vld [vmem:[#allocation23 + $0x1c] sm:$0xf]
    %v1945 = vld [vmem:[#allocation23 + $0x20] sm:$0xf]
    %v1946 = vld [vmem:[#allocation23 + $0x24] sm:$0xf]
    %v1947 = vld [vmem:[#allocation23 + $0x28] sm:$0xf]
    %v1948 = vld [vmem:[#allocation23 + $0x2c] sm:$0xf]
    %v1949 = vld [vmem:[#allocation23 + $0x30] sm:$0xf]
    %v1950 = vld [vmem:[#allocation23 + $0x34] sm:$0xf]
    %v1951 = vld [vmem:[#allocation23 + $0x38] sm:$0xf]
    %v1952 = vld [vmem:[#allocation23 + $0x3c] sm:$0xf]
    %v1953 = vld [vmem:[#allocation25] sm:$0x1]
    %v1955 = vlaneseq
    %v1956 = vshrl.u32 %v1955, 7
    %v1957 = vsub.s32 0, %v1956
    %v1958 = vrot.slane %v1953, %v1957
    %v1976 = vunpack.c.l.b16 %v1937
    %v1977 = vunpack.c.l.b16 %v1938
    %v1978 = vunpack.c.l.b16 %v1939
    %v1979 = vunpack.c.l.b16 %v1940
    %v1980 = vunpack.c.l.b16 %v1941
    %v1981 = vunpack.c.l.b16 %v1942
    %v1982 = vunpack.c.l.b16 %v1943
    %v1983 = vunpack.c.l.b16 %v1944
    %v1984 = vunpack.c.l.b16 %v1945
    %v1985 = vunpack.c.l.b16 %v1946
    %v1986 = vunpack.c.l.b16 %v1947
    %v1987 = vunpack.c.l.b16 %v1948
    %v1988 = vunpack.c.l.b16 %v1949
    %v1989 = vunpack.c.l.b16 %v1950
    %v1990 = vunpack.c.l.b16 %v1951
    %v1991 = vunpack.c.l.b16 %v1952
    %v1992 = vpack.c.b16 %v1977, %v1976
    %v1993 = vpack.c.b16 %v1979, %v1978
    %v1994 = vpack.c.b16 %v1981, %v1980
    %v1995 = vpack.c.b16 %v1983, %v1982
    %v1996 = vpack.c.b16 %v1985, %v1984
    %v1997 = vpack.c.b16 %v1987, %v1986
    %v1998 = vpack.c.b16 %v1989, %v1988
    %v1999 = vpack.c.b16 %v1991, %v1990
    %2008 = vmatprep.subr.bf16.mxu0 0
    %2009 = vmatpush1.bf16.msra.mxu0 %v1999
    %2010 = vmatprep.subr.bf16.mxu0 0
    %2011 = vmatpush1.bf16.msra.mxu0 %v1998
    %2012 = vmatprep.subr.bf16.mxu0 0
    %2013 = vmatpush1.bf16.msra.mxu0 %v1997
    %2014 = vmatprep.subr.bf16.mxu0 0
    %2015 = vmatpush1.bf16.msra.mxu0 %v1996
    %2016 = vmatprep.subr.bf16.mxu0 0
    %2017 = vmatpush1.bf16.msra.mxu0 %v1995
    %2018 = vmatprep.subr.bf16.mxu0 0
    %2019 = vmatpush1.bf16.msra.mxu0 %v1994
    %2020 = vmatprep.subr.bf16.mxu0 0
    %2021 = vmatpush1.bf16.msra.mxu0 %v1993
    %2022 = vmatprep.subr.bf16.mxu0 0
    %2023 = vmatpush1.bf16.msra.mxu0 %v1992
    %2024 = vmatprep.subr.bf16.mxu0 0
    %2025 = vmatpush2.bf16.msra.mxu0 0
    %2026 = vmatprep.subr.bf16.mxu0 0
    %2027 = vmatpush2.bf16.msra.mxu0 0
    %2028 = vmatprep.subr.bf16.mxu0 0
    %2029 = vmatpush2.bf16.msra.mxu0 0
    %2030 = vmatprep.subr.bf16.mxu0 0
    %2031 = vmatpush2.bf16.msra.mxu0 0
    %2032 = vmatprep.subr.bf16.mxu0 0
    %2033 = vmatpush2.bf16.msra.mxu0 0
    %2034 = vmatprep.subr.bf16.mxu0 0
    %2035 = vmatpush2.bf16.msra.mxu0 0
    %2036 = vmatprep.subr.bf16.mxu0 0
    %2037 = vmatpush2.bf16.msra.mxu0 0
    %2038 = vmatprep.subr.bf16.mxu0 0
    %2039 = vmatpush2.bf16.msra.mxu0 0
    %2040 = vmatprep.mubr.bf16.mxu0 0
    %2041 = vmatmul.mubr.bf16.gmra.mxu0 %v1936
    %v2042 = vpop.f32.mrf.mxu0
    %v2043 = vadd.f32 %v1958, %v2042
    %v2044 = vpop.f32.mrf.mxu0
    %v2045 = vpop.f32.mrf.mxu0
    %v2046 = vadd.f32 %v1958, %v2045
    %v2047 = vpop.f32.mrf.mxu0
    %2048 = vdwg.mxu0
    %v2049 = vpack.c.bf16 %v1649, %v1648
    %v2050 = vpack.c.bf16 %v1651, %v1650
    %v2051 = vld [vmem:[#allocation26] sm:$0xf]
    %v2052 = vld [vmem:[#allocation26 + $0x4] sm:$0xf]
    %v2053 = vld [vmem:[#allocation26 + $0x8] sm:$0xf]
    %v2054 = vld [vmem:[#allocation26 + $0xc] sm:$0xf]
    %v2055 = vld [vmem:[#allocation26 + $0x10] sm:$0xf]
    %v2056 = vld [vmem:[#allocation26 + $0x14] sm:$0xf]
    %v2057 = vld [vmem:[#allocation26 + $0x18] sm:$0xf]
    %v2058 = vld [vmem:[#allocation26 + $0x1c] sm:$0xf]
    %v2059 = vld [vmem:[#allocation26 + $0x20] sm:$0xf]
    %v2060 = vld [vmem:[#allocation26 + $0x24] sm:$0xf]
    %v2061 = vld [vmem:[#allocation26 + $0x28] sm:$0xf]
    %v2062 = vld [vmem:[#allocation26 + $0x2c] sm:$0xf]
    %v2063 = vld [vmem:[#allocation26 + $0x30] sm:$0xf]
    %v2064 = vld [vmem:[#allocation26 + $0x34] sm:$0xf]
    %v2065 = vld [vmem:[#allocation26 + $0x38] sm:$0xf]
    %v2066 = vld [vmem:[#allocation26 + $0x3c] sm:$0xf]
    %v2067 = vld [vmem:[#allocation28] sm:$0x1]
    %v2069 = vlaneseq
    %v2070 = vshrl.u32 %v2069, 7
    %v2071 = vsub.s32 0, %v2070
    %v2072 = vrot.slane %v2067, %v2071
    %v2090 = vunpack.c.l.b16 %v2051
    %v2091 = vunpack.c.l.b16 %v2052
    %v2092 = vunpack.c.l.b16 %v2053
    %v2093 = vunpack.c.l.b16 %v2054
    %v2094 = vunpack.c.l.b16 %v2055
    %v2095 = vunpack.c.l.b16 %v2056
    %v2096 = vunpack.c.l.b16 %v2057
    %v2097 = vunpack.c.l.b16 %v2058
    %v2098 = vunpack.c.l.b16 %v2059
    %v2099 = vunpack.c.l.b16 %v2060
    %v2100 = vunpack.c.l.b16 %v2061
    %v2101 = vunpack.c.l.b16 %v2062
    %v2102 = vunpack.c.l.b16 %v2063
    %v2103 = vunpack.c.l.b16 %v2064
    %v2104 = vunpack.c.l.b16 %v2065
    %v2105 = vunpack.c.l.b16 %v2066
    %v2106 = vpack.c.b16 %v2091, %v2090
    %v2107 = vpack.c.b16 %v2093, %v2092
    %v2108 = vpack.c.b16 %v2095, %v2094
    %v2109 = vpack.c.b16 %v2097, %v2096
    %v2110 = vpack.c.b16 %v2099, %v2098
    %v2111 = vpack.c.b16 %v2101, %v2100
    %v2112 = vpack.c.b16 %v2103, %v2102
    %v2113 = vpack.c.b16 %v2105, %v2104
    %2122 = vmatprep.subr.bf16.mxu0 0
    %2123 = vmatpush1.bf16.msra.mxu0 %v2113
    %2124 = vmatprep.subr.bf16.mxu0 0
    %2125 = vmatpush1.bf16.msra.mxu0 %v2112
    %2126 = vmatprep.subr.bf16.mxu0 0
    %2127 = vmatpush1.bf16.msra.mxu0 %v2111
    %2128 = vmatprep.subr.bf16.mxu0 0
    %2129 = vmatpush1.bf16.msra.mxu0 %v2110
    %2130 = vmatprep.subr.bf16.mxu0 0
    %2131 = vmatpush1.bf16.msra.mxu0 %v2109
    %2132 = vmatprep.subr.bf16.mxu0 0
    %2133 = vmatpush1.bf16.msra.mxu0 %v2108
    %2134 = vmatprep.subr.bf16.mxu0 0
    %2135 = vmatpush1.bf16.msra.mxu0 %v2107
    %2136 = vmatprep.subr.bf16.mxu0 0
    %2137 = vmatpush1.bf16.msra.mxu0 %v2106
    %2138 = vmatprep.subr.bf16.mxu0 0
    %2139 = vmatpush2.bf16.msra.mxu0 0
    %2140 = vmatprep.subr.bf16.mxu0 0
    %2141 = vmatpush2.bf16.msra.mxu0 0
    %2142 = vmatprep.subr.bf16.mxu0 0
    %2143 = vmatpush2.bf16.msra.mxu0 0
    %2144 = vmatprep.subr.bf16.mxu0 0
    %2145 = vmatpush2.bf16.msra.mxu0 0
    %2146 = vmatprep.subr.bf16.mxu0 0
    %2147 = vmatpush2.bf16.msra.mxu0 0
    %2148 = vmatprep.subr.bf16.mxu0 0
    %2149 = vmatpush2.bf16.msra.mxu0 0
    %2150 = vmatprep.subr.bf16.mxu0 0
    %2151 = vmatpush2.bf16.msra.mxu0 0
    %2152 = vmatprep.subr.bf16.mxu0 0
    %2153 = vmatpush2.bf16.msra.mxu0 0
    %2154 = vmatprep.mubr.bf16.mxu0 0
    %2155 = vmatmul.mubr.bf16.gmra.mxu0 %v2049
    %v2156 = vpop.f32.mrf.mxu0
    %v2157 = vadd.f32 %v2072, %v2156
    %v2158 = vpop.f32.mrf.mxu0
    %v2159 = vpop.f32.mrf.mxu0
    %v2160 = vadd.f32 %v2072, %v2159
    %v2161 = vpop.f32.mrf.mxu0
    %2162 = vmatprep.mubr.bf16.mxu0 0
    %2163 = vmatmul.mubr.bf16.gmra.mxu0 %v2050
    %v2164 = vpop.f32.mrf.mxu0
    %v2165 = vadd.f32 %v2072, %v2164
    %v2166 = vpop.f32.mrf.mxu0
    %v2167 = vpop.f32.mrf.mxu0
    %v2168 = vadd.f32 %v2072, %v2167
    %v2169 = vpop.f32.mrf.mxu0
    %2170 = vdwg.mxu0
    %v2171 = vld [vmem:[%s13] sm:$0x1]
    %v2172 = vpack.c.bf16 %v2046, %v2043
    %v2174 = vsel %vm674, %v2171, 0
    %2176 = vmatprep.subr.bf16.mxu0 0
    %2177 = vmatpush1.bf16.msra.mxu0 0
    %2178 = vmatprep.subr.bf16.mxu0 0
    %2179 = vmatpush1.bf16.msra.mxu0 0
    %2180 = vmatprep.subr.bf16.mxu0 0
    %2181 = vmatpush1.bf16.msra.mxu0 0
    %2182 = vmatprep.subr.bf16.mxu0 0
    %2183 = vmatpush1.bf16.msra.mxu0 0
    %2184 = vmatprep.subr.bf16.mxu0 0
    %2185 = vmatpush1.bf16.msra.mxu0 0
    %2186 = vmatprep.subr.bf16.mxu0 0
    %2187 = vmatpush1.bf16.msra.mxu0 0
    %2188 = vmatprep.subr.bf16.mxu0 0
    %2189 = vmatpush1.bf16.msra.mxu0 0
    %2190 = vmatprep.subr.bf16.mxu0 0
    %2191 = vmatpush1.bf16.msra.mxu0 %v2172
    %2192 = vmatprep.subr.bf16.mxu0 0
    %2193 = vmatpush2.bf16.msra.mxu0 0
    %2194 = vmatprep.subr.bf16.mxu0 0
    %2195 = vmatpush2.bf16.msra.mxu0 0
    %2196 = vmatprep.subr.bf16.mxu0 0
    %2197 = vmatpush2.bf16.msra.mxu0 0
    %2198 = vmatprep.subr.bf16.mxu0 0
    %2199 = vmatpush2.bf16.msra.mxu0 0
    %2200 = vmatprep.subr.bf16.mxu0 0
    %2201 = vmatpush2.bf16.msra.mxu0 0
    %2202 = vmatprep.subr.bf16.mxu0 0
    %2203 = vmatpush2.bf16.msra.mxu0 0
    %2204 = vmatprep.subr.bf16.mxu0 0
    %2205 = vmatpush2.bf16.msra.mxu0 0
    %2206 = vmatprep.subr.bf16.mxu0 0
    %2207 = vmatpush2.bf16.msra.mxu0 0
    %2208 = vmatprep.mubr.bf16.mxu0 0
    %2209 = vmatmul.mubr.bf16.gmra.mxu0 %v2174
    %v2210 = vpop.f32.mrf.mxu0
    %v2211 = vadd.f32 0.0, %v2210
    %v2212 = vpop.f32.mrf.mxu0
    %v2213 = vpop.f32.mrf.mxu0
    %v2214 = vpop.f32.mrf.mxu0
    %2215 = vdwg.mxu0
    %v2216 = vld [vmem:[%s15] sm:$0x1]
    %v2217 = vpack.c.bf16 %v2160, %v2157
    %v2218 = vpack.c.bf16 %v2168, %v2165
    %v2220 = vsel %vm499, %v2216, 0
    %2222 = vmatprep.subr.bf16.mxu0 0
    %2223 = vmatpush1.bf16.msra.mxu0 0
    %2224 = vmatprep.subr.bf16.mxu0 0
    %2225 = vmatpush1.bf16.msra.mxu0 0
    %2226 = vmatprep.subr.bf16.mxu0 0
    %2227 = vmatpush1.bf16.msra.mxu0 0
    %2228 = vmatprep.subr.bf16.mxu0 0
    %2229 = vmatpush1.bf16.msra.mxu0 0
    %2230 = vmatprep.subr.bf16.mxu0 0
    %2231 = vmatpush1.bf16.msra.mxu0 0
    %2232 = vmatprep.subr.bf16.mxu0 0
    %2233 = vmatpush1.bf16.msra.mxu0 0
    %2234 = vmatprep.subr.bf16.mxu0 0
    %2235 = vmatpush1.bf16.msra.mxu0 %v2218
    %2236 = vmatprep.subr.bf16.mxu0 0
    %2237 = vmatpush1.bf16.msra.mxu0 %v2217
    %2238 = vmatprep.subr.bf16.mxu0 0
    %2239 = vmatpush2.bf16.msra.mxu0 0
    %2240 = vmatprep.subr.bf16.mxu0 0
    %2241 = vmatpush2.bf16.msra.mxu0 0
    %2242 = vmatprep.subr.bf16.mxu0 0
    %2243 = vmatpush2.bf16.msra.mxu0 0
    %2244 = vmatprep.subr.bf16.mxu0 0
    %2245 = vmatpush2.bf16.msra.mxu0 0
    %2246 = vmatprep.subr.bf16.mxu0 0
    %2247 = vmatpush2.bf16.msra.mxu0 0
    %2248 = vmatprep.subr.bf16.mxu0 0
    %2249 = vmatpush2.bf16.msra.mxu0 0
    %2250 = vmatprep.subr.bf16.mxu0 0
    %2251 = vmatpush2.bf16.msra.mxu0 0
    %2252 = vmatprep.subr.bf16.mxu0 0
    %2253 = vmatpush2.bf16.msra.mxu0 0
    %2254 = vmatprep.mubr.bf16.mxu0 0
    %2255 = vmatmul.mubr.bf16.gmra.mxu0 %v2220
    %v2256 = vpop.f32.mrf.mxu0
    %v2257 = vadd.f32 0.0, %v2256
    %v2258 = vpop.f32.mrf.mxu0
    %v2259 = vpop.f32.mrf.mxu0
    %v2260 = vpop.f32.mrf.mxu0
    %2261 = vdwg.mxu0
    %v2262 = vpack.c.bf16 %v2211, %v2211
    %v2263 = vld [vmem:[#allocation29] sm:$0xf]
    %v2264 = vld [vmem:[#allocation29 + $0x4] sm:$0xf]
    %v2265 = vld [vmem:[#allocation29 + $0x8] sm:$0xf]
    %v2266 = vld [vmem:[#allocation29 + $0xc] sm:$0xf]
    %v2267 = vld [vmem:[#allocation29 + $0x10] sm:$0xf]
    %v2268 = vld [vmem:[#allocation29 + $0x14] sm:$0xf]
    %v2269 = vld [vmem:[#allocation29 + $0x18] sm:$0xf]
    %v2270 = vld [vmem:[#allocation29 + $0x1c] sm:$0xf]
    %v2271 = vld [vmem:[#allocation29 + $0x20] sm:$0xf]
    %v2272 = vld [vmem:[#allocation29 + $0x24] sm:$0xf]
    %v2273 = vld [vmem:[#allocation29 + $0x28] sm:$0xf]
    %v2274 = vld [vmem:[#allocation29 + $0x2c] sm:$0xf]
    %v2275 = vld [vmem:[#allocation29 + $0x30] sm:$0xf]
    %v2276 = vld [vmem:[#allocation29 + $0x34] sm:$0xf]
    %v2277 = vld [vmem:[#allocation29 + $0x38] sm:$0xf]
    %v2278 = vld [vmem:[#allocation29 + $0x3c] sm:$0xf]
    %v2279 = vpack.c.bf16 %v2257, %v2257
    %v2280 = vld [vmem:[#allocation31] sm:$0xf]
    %v2281 = vld [vmem:[#allocation31 + $0x4] sm:$0xf]
    %v2282 = vld [vmem:[#allocation31 + $0x8] sm:$0xf]
    %v2283 = vld [vmem:[#allocation31 + $0xc] sm:$0xf]
    %v2284 = vld [vmem:[#allocation31 + $0x10] sm:$0xf]
    %v2285 = vld [vmem:[#allocation31 + $0x14] sm:$0xf]
    %v2286 = vld [vmem:[#allocation31 + $0x18] sm:$0xf]
    %v2287 = vld [vmem:[#allocation31 + $0x1c] sm:$0xf]
    %v2288 = vld [vmem:[#allocation31 + $0x20] sm:$0xf]
    %v2289 = vld [vmem:[#allocation31 + $0x24] sm:$0xf]
    %v2290 = vld [vmem:[#allocation31 + $0x28] sm:$0xf]
    %v2291 = vld [vmem:[#allocation31 + $0x2c] sm:$0xf]
    %v2292 = vld [vmem:[#allocation31 + $0x30] sm:$0xf]
    %v2293 = vld [vmem:[#allocation31 + $0x34] sm:$0xf]
    %v2294 = vld [vmem:[#allocation31 + $0x38] sm:$0xf]
    %v2295 = vld [vmem:[#allocation31 + $0x3c] sm:$0xf]
    %v2312 = vunpack.c.l.b16 %v2280
    %v2313 = vunpack.c.l.b16 %v2281
    %v2314 = vunpack.c.l.b16 %v2282
    %v2315 = vunpack.c.l.b16 %v2283
    %v2316 = vunpack.c.l.b16 %v2284
    %v2317 = vunpack.c.l.b16 %v2285
    %v2318 = vunpack.c.l.b16 %v2286
    %v2319 = vunpack.c.l.b16 %v2287
    %v2320 = vunpack.c.l.b16 %v2288
    %v2321 = vunpack.c.l.b16 %v2289
    %v2322 = vunpack.c.l.b16 %v2290
    %v2323 = vunpack.c.l.b16 %v2291
    %v2324 = vunpack.c.l.b16 %v2292
    %v2325 = vunpack.c.l.b16 %v2293
    %v2326 = vunpack.c.l.b16 %v2294
    %v2327 = vunpack.c.l.b16 %v2295
    %v2328 = vpack.c.b16 %v2313, %v2312
    %v2329 = vpack.c.b16 %v2315, %v2314
    %v2330 = vpack.c.b16 %v2317, %v2316
    %v2331 = vpack.c.b16 %v2319, %v2318
    %v2332 = vpack.c.b16 %v2321, %v2320
    %v2333 = vpack.c.b16 %v2323, %v2322
    %v2334 = vpack.c.b16 %v2325, %v2324
    %v2335 = vpack.c.b16 %v2327, %v2326
    %2344 = vmatprep.subr.bf16.mxu0 0
    %2345 = vmatpush1.bf16.msra.mxu0 %v2335
    %2346 = vmatprep.subr.bf16.mxu0 0
    %2347 = vmatpush1.bf16.msra.mxu0 %v2334
    %2348 = vmatprep.subr.bf16.mxu0 0
    %2349 = vmatpush1.bf16.msra.mxu0 %v2333
    %2350 = vmatprep.subr.bf16.mxu0 0
    %2351 = vmatpush1.bf16.msra.mxu0 %v2332
    %2352 = vmatprep.subr.bf16.mxu0 0
    %2353 = vmatpush1.bf16.msra.mxu0 %v2331
    %2354 = vmatprep.subr.bf16.mxu0 0
    %2355 = vmatpush1.bf16.msra.mxu0 %v2330
    %2356 = vmatprep.subr.bf16.mxu0 0
    %2357 = vmatpush1.bf16.msra.mxu0 %v2329
    %2358 = vmatprep.subr.bf16.mxu0 0
    %2359 = vmatpush1.bf16.msra.mxu0 %v2328
    %2360 = vmatprep.subr.bf16.mxu0 0
    %2361 = vmatpush2.bf16.msra.mxu0 0
    %2362 = vmatprep.subr.bf16.mxu0 0
    %2363 = vmatpush2.bf16.msra.mxu0 0
    %2364 = vmatprep.subr.bf16.mxu0 0
    %2365 = vmatpush2.bf16.msra.mxu0 0
    %2366 = vmatprep.subr.bf16.mxu0 0
    %2367 = vmatpush2.bf16.msra.mxu0 0
    %2368 = vmatprep.subr.bf16.mxu0 0
    %2369 = vmatpush2.bf16.msra.mxu0 0
    %2370 = vmatprep.subr.bf16.mxu0 0
    %2371 = vmatpush2.bf16.msra.mxu0 0
    %2372 = vmatprep.subr.bf16.mxu0 0
    %2373 = vmatpush2.bf16.msra.mxu0 0
    %2374 = vmatprep.subr.bf16.mxu0 0
    %2375 = vmatpush2.bf16.msra.mxu0 0
    %2376 = vmatprep.mubr.bf16.mxu0 0
    %2377 = vmatmul.mubr.bf16.gmra.mxu0 %v2279
    %v2378 = vpop.f32.mrf.mxu0
    %v2379 = vadd.f32 0.0, %v2378
    %v2380 = vpop.f32.mrf.mxu0
    %v2381 = vpop.f32.mrf.mxu0
    %v2382 = vpop.f32.mrf.mxu0
    %2383 = vdwg.mxu0
    %v2400 = vunpack.c.l.b16 %v2263
    %v2401 = vunpack.c.l.b16 %v2264
    %v2402 = vunpack.c.l.b16 %v2265
    %v2403 = vunpack.c.l.b16 %v2266
    %v2404 = vunpack.c.l.b16 %v2267
    %v2405 = vunpack.c.l.b16 %v2268
    %v2406 = vunpack.c.l.b16 %v2269
    %v2407 = vunpack.c.l.b16 %v2270
    %v2408 = vunpack.c.l.b16 %v2271
    %v2409 = vunpack.c.l.b16 %v2272
    %v2410 = vunpack.c.l.b16 %v2273
    %v2411 = vunpack.c.l.b16 %v2274
    %v2412 = vunpack.c.l.b16 %v2275
    %v2413 = vunpack.c.l.b16 %v2276
    %v2414 = vunpack.c.l.b16 %v2277
    %v2415 = vunpack.c.l.b16 %v2278
    %v2416 = vpack.c.b16 %v2401, %v2400
    %v2417 = vpack.c.b16 %v2403, %v2402
    %v2418 = vpack.c.b16 %v2405, %v2404
    %v2419 = vpack.c.b16 %v2407, %v2406
    %v2420 = vpack.c.b16 %v2409, %v2408
    %v2421 = vpack.c.b16 %v2411, %v2410
    %v2422 = vpack.c.b16 %v2413, %v2412
    %v2423 = vpack.c.b16 %v2415, %v2414
    %2432 = vmatprep.subr.bf16.mxu0 0
    %2433 = vmatpush1.bf16.msra.mxu0 %v2423
    %2434 = vmatprep.subr.bf16.mxu0 0
    %2435 = vmatpush1.bf16.msra.mxu0 %v2422
    %2436 = vmatprep.subr.bf16.mxu0 0
    %2437 = vmatpush1.bf16.msra.mxu0 %v2421
    %2438 = vmatprep.subr.bf16.mxu0 0
    %2439 = vmatpush1.bf16.msra.mxu0 %v2420
    %2440 = vmatprep.subr.bf16.mxu0 0
    %2441 = vmatpush1.bf16.msra.mxu0 %v2419
    %2442 = vmatprep.subr.bf16.mxu0 0
    %2443 = vmatpush1.bf16.msra.mxu0 %v2418
    %2444 = vmatprep.subr.bf16.mxu0 0
    %2445 = vmatpush1.bf16.msra.mxu0 %v2417
    %2446 = vmatprep.subr.bf16.mxu0 0
    %2447 = vmatpush1.bf16.msra.mxu0 %v2416
    %2448 = vmatprep.subr.bf16.mxu0 0
    %2449 = vmatpush2.bf16.msra.mxu0 0
    %2450 = vmatprep.subr.bf16.mxu0 0
    %2451 = vmatpush2.bf16.msra.mxu0 0
    %2452 = vmatprep.subr.bf16.mxu0 0
    %2453 = vmatpush2.bf16.msra.mxu0 0
    %2454 = vmatprep.subr.bf16.mxu0 0
    %2455 = vmatpush2.bf16.msra.mxu0 0
    %2456 = vmatprep.subr.bf16.mxu0 0
    %2457 = vmatpush2.bf16.msra.mxu0 0
    %2458 = vmatprep.subr.bf16.mxu0 0
    %2459 = vmatpush2.bf16.msra.mxu0 0
    %2460 = vmatprep.subr.bf16.mxu0 0
    %2461 = vmatpush2.bf16.msra.mxu0 0
    %2462 = vmatprep.subr.bf16.mxu0 0
    %2463 = vmatpush2.bf16.msra.mxu0 0
    %2464 = vmatprep.mubr.bf16.mxu0 0
    %2465 = vmatmul.mubr.bf16.gmra.mxu0 %v2262
    %v2466 = vpop.f32.mrf.mxu0
    %v2467 = vadd.f32 %v2379, %v2466
    %v2468 = vpop.f32.mrf.mxu0
    %v2469 = vpop.f32.mrf.mxu0
    %v2470 = vpop.f32.mrf.mxu0
    %2471 = vdwg.mxu0
    %v2472 = vld [vmem:[#allocation32] sm:$0x1]
    %v2474 = vlaneseq
    %v2475 = vshrl.u32 %v2474, 7
    %v2476 = vsub.s32 0, %v2475
    %v2477 = vrot.slane %v2472, %v2476
    %v2479 = vadd.f32 %v2467, %v2477
    %v2480 = vmax.f32 %v2479, 0.0
    %v2481 = vpack.c.bf16 %v2480, %v2480
    %v2482 = vld [vmem:[#allocation34] sm:$0xf]
    %v2483 = vld [vmem:[#allocation34 + $0x4] sm:$0xf]
    %v2484 = vld [vmem:[#allocation34 + $0x8] sm:$0xf]
    %v2485 = vld [vmem:[#allocation34 + $0xc] sm:$0xf]
    %v2486 = vld [vmem:[#allocation34 + $0x10] sm:$0xf]
    %v2487 = vld [vmem:[#allocation34 + $0x14] sm:$0xf]
    %v2488 = vld [vmem:[#allocation34 + $0x18] sm:$0xf]
    %v2489 = vld [vmem:[#allocation34 + $0x1c] sm:$0xf]
    %v2490 = vld [vmem:[#allocation34 + $0x20] sm:$0xf]
    %v2491 = vld [vmem:[#allocation34 + $0x24] sm:$0xf]
    %v2492 = vld [vmem:[#allocation34 + $0x28] sm:$0xf]
    %v2493 = vld [vmem:[#allocation34 + $0x2c] sm:$0xf]
    %v2494 = vld [vmem:[#allocation34 + $0x30] sm:$0xf]
    %v2495 = vld [vmem:[#allocation34 + $0x34] sm:$0xf]
    %v2496 = vld [vmem:[#allocation34 + $0x38] sm:$0xf]
    %v2497 = vld [vmem:[#allocation34 + $0x3c] sm:$0xf]
    %v2498 = vld [vmem:[#allocation35] sm:$0x1]
    %v2500 = vlaneseq
    %v2501 = vshrl.u32 %v2500, 7
    %v2502 = vsub.s32 0, %v2501
    %v2503 = vrot.slane %v2498, %v2502
    %v2521 = vunpack.c.l.b16 %v2482
    %v2522 = vunpack.c.l.b16 %v2483
    %v2523 = vunpack.c.l.b16 %v2484
    %v2524 = vunpack.c.l.b16 %v2485
    %v2525 = vunpack.c.l.b16 %v2486
    %v2526 = vunpack.c.l.b16 %v2487
    %v2527 = vunpack.c.l.b16 %v2488
    %v2528 = vunpack.c.l.b16 %v2489
    %v2529 = vunpack.c.l.b16 %v2490
    %v2530 = vunpack.c.l.b16 %v2491
    %v2531 = vunpack.c.l.b16 %v2492
    %v2532 = vunpack.c.l.b16 %v2493
    %v2533 = vunpack.c.l.b16 %v2494
    %v2534 = vunpack.c.l.b16 %v2495
    %v2535 = vunpack.c.l.b16 %v2496
    %v2536 = vunpack.c.l.b16 %v2497
    %v2537 = vpack.c.b16 %v2522, %v2521
    %v2538 = vpack.c.b16 %v2524, %v2523
    %v2539 = vpack.c.b16 %v2526, %v2525
    %v2540 = vpack.c.b16 %v2528, %v2527
    %v2541 = vpack.c.b16 %v2530, %v2529
    %v2542 = vpack.c.b16 %v2532, %v2531
    %v2543 = vpack.c.b16 %v2534, %v2533
    %v2544 = vpack.c.b16 %v2536, %v2535
    %2553 = vmatprep.subr.bf16.mxu0 0
    %2554 = vmatpush1.bf16.msra.mxu0 %v2544
    %2555 = vmatprep.subr.bf16.mxu0 0
    %2556 = vmatpush1.bf16.msra.mxu0 %v2543
    %2557 = vmatprep.subr.bf16.mxu0 0
    %2558 = vmatpush1.bf16.msra.mxu0 %v2542
    %2559 = vmatprep.subr.bf16.mxu0 0
    %2560 = vmatpush1.bf16.msra.mxu0 %v2541
    %2561 = vmatprep.subr.bf16.mxu0 0
    %2562 = vmatpush1.bf16.msra.mxu0 %v2540
    %2563 = vmatprep.subr.bf16.mxu0 0
    %2564 = vmatpush1.bf16.msra.mxu0 %v2539
    %2565 = vmatprep.subr.bf16.mxu0 0
    %2566 = vmatpush1.bf16.msra.mxu0 %v2538
    %2567 = vmatprep.subr.bf16.mxu0 0
    %2568 = vmatpush1.bf16.msra.mxu0 %v2537
    %2569 = vmatprep.subr.bf16.mxu0 0
    %2570 = vmatpush2.bf16.msra.mxu0 0
    %2571 = vmatprep.subr.bf16.mxu0 0
    %2572 = vmatpush2.bf16.msra.mxu0 0
    %2573 = vmatprep.subr.bf16.mxu0 0
    %2574 = vmatpush2.bf16.msra.mxu0 0
    %2575 = vmatprep.subr.bf16.mxu0 0
    %2576 = vmatpush2.bf16.msra.mxu0 0
    %2577 = vmatprep.subr.bf16.mxu0 0
    %2578 = vmatpush2.bf16.msra.mxu0 0
    %2579 = vmatprep.subr.bf16.mxu0 0
    %2580 = vmatpush2.bf16.msra.mxu0 0
    %2581 = vmatprep.subr.bf16.mxu0 0
    %2582 = vmatpush2.bf16.msra.mxu0 0
    %2583 = vmatprep.subr.bf16.mxu0 0
    %2584 = vmatpush2.bf16.msra.mxu0 0
    %2585 = vmatprep.mubr.bf16.mxu0 0
    %2586 = vmatmul.mubr.bf16.gmra.mxu0 %v2481
    %v2587 = vpop.f32.mrf.mxu0
    %v2588 = vadd.f32 %v2503, %v2587
    %v2589 = vpop.f32.mrf.mxu0
    %v2590 = vpop.f32.mrf.mxu0
    %v2591 = vpop.f32.mrf.mxu0
    %2592 = vdwg.mxu0
    %v2593 = vmax.f32 %v2588, 0.0
    %v2594 = vpack.c.bf16 %v2593, %v2593
    %v2595 = vld [vmem:[%s55] sm:$0xf]
    %v2596 = vld [vmem:[%s55 + $0x4] sm:$0xf]
    %v2597 = vld [vmem:[%s55 + $0x8] sm:$0xf]
    %v2598 = vld [vmem:[%s55 + $0xc] sm:$0xf]
    %v2599 = vld [vmem:[%s55 + $0x10] sm:$0xf]
    %v2600 = vld [vmem:[%s55 + $0x14] sm:$0xf]
    %v2601 = vld [vmem:[%s55 + $0x18] sm:$0xf]
    %v2602 = vld [vmem:[%s55 + $0x1c] sm:$0xf]
    %v2603 = vld [vmem:[%s55 + $0x20] sm:$0xf]
    %v2604 = vld [vmem:[%s55 + $0x24] sm:$0xf]
    %v2605 = vld [vmem:[%s55 + $0x28] sm:$0xf]
    %v2606 = vld [vmem:[%s55 + $0x2c] sm:$0xf]
    %v2607 = vld [vmem:[%s55 + $0x30] sm:$0xf]
    %v2608 = vld [vmem:[%s55 + $0x34] sm:$0xf]
    %v2609 = vld [vmem:[%s55 + $0x38] sm:$0xf]
    %v2610 = vld [vmem:[%s55 + $0x3c] sm:$0xf]
    %v2611 = vld [vmem:[#allocation2] sm:$0x1]
    %v2613 = vlaneseq
    %v2614 = vshrl.u32 %v2613, 7
    %v2615 = vsub.s32 0, %v2614
    %v2616 = vrot.slane %v2611, %v2615
    %v2634 = vunpack.c.l.b16 %v2595
    %v2635 = vunpack.c.l.b16 %v2596
    %v2636 = vunpack.c.l.b16 %v2597
    %v2637 = vunpack.c.l.b16 %v2598
    %v2638 = vunpack.c.l.b16 %v2599
    %v2639 = vunpack.c.l.b16 %v2600
    %v2640 = vunpack.c.l.b16 %v2601
    %v2641 = vunpack.c.l.b16 %v2602
    %v2642 = vunpack.c.l.b16 %v2603
    %v2643 = vunpack.c.l.b16 %v2604
    %v2644 = vunpack.c.l.b16 %v2605
    %v2645 = vunpack.c.l.b16 %v2606
    %v2646 = vunpack.c.l.b16 %v2607
    %v2647 = vunpack.c.l.b16 %v2608
    %v2648 = vunpack.c.l.b16 %v2609
    %v2649 = vunpack.c.l.b16 %v2610
    %v2650 = vpack.c.b16 %v2635, %v2634
    %v2651 = vpack.c.b16 %v2637, %v2636
    %v2652 = vpack.c.b16 %v2639, %v2638
    %v2653 = vpack.c.b16 %v2641, %v2640
    %v2654 = vpack.c.b16 %v2643, %v2642
    %v2655 = vpack.c.b16 %v2645, %v2644
    %v2656 = vpack.c.b16 %v2647, %v2646
    %v2657 = vpack.c.b16 %v2649, %v2648
    %2666 = vmatprep.subr.bf16.mxu0 0
    %2667 = vmatpush1.bf16.msra.mxu0 %v2657
    %2668 = vmatprep.subr.bf16.mxu0 0
    %2669 = vmatpush1.bf16.msra.mxu0 %v2656
    %2670 = vmatprep.subr.bf16.mxu0 0
    %2671 = vmatpush1.bf16.msra.mxu0 %v2655
    %2672 = vmatprep.subr.bf16.mxu0 0
    %2673 = vmatpush1.bf16.msra.mxu0 %v2654
    %2674 = vmatprep.subr.bf16.mxu0 0
    %2675 = vmatpush1.bf16.msra.mxu0 %v2653
    %2676 = vmatprep.subr.bf16.mxu0 0
    %2677 = vmatpush1.bf16.msra.mxu0 %v2652
    %2678 = vmatprep.subr.bf16.mxu0 0
    %2679 = vmatpush1.bf16.msra.mxu0 %v2651
    %2680 = vmatprep.subr.bf16.mxu0 0
    %2681 = vmatpush1.bf16.msra.mxu0 %v2650
    %2682 = vmatprep.subr.bf16.mxu0 0
    %2683 = vmatpush2.bf16.msra.mxu0 0
    %2684 = vmatprep.subr.bf16.mxu0 0
    %2685 = vmatpush2.bf16.msra.mxu0 0
    %2686 = vmatprep.subr.bf16.mxu0 0
    %2687 = vmatpush2.bf16.msra.mxu0 0
    %2688 = vmatprep.subr.bf16.mxu0 0
    %2689 = vmatpush2.bf16.msra.mxu0 0
    %2690 = vmatprep.subr.bf16.mxu0 0
    %2691 = vmatpush2.bf16.msra.mxu0 0
    %2692 = vmatprep.subr.bf16.mxu0 0
    %2693 = vmatpush2.bf16.msra.mxu0 0
    %2694 = vmatprep.subr.bf16.mxu0 0
    %2695 = vmatpush2.bf16.msra.mxu0 0
    %2696 = vmatprep.subr.bf16.mxu0 0
    %2697 = vmatpush2.bf16.msra.mxu0 0
    %2698 = vmatprep.mubr.bf16.mxu0 0
    %2699 = vmatmul.mubr.bf16.gmra.mxu0 %v2594
    %v2700 = vpop.f32.mrf.mxu0
    %v2701 = vadd.f32 %v2616, %v2700
    %v2702 = vpop.f32.mrf.mxu0
    %v2703 = vpop.f32.mrf.mxu0
    %v2704 = vpop.f32.mrf.mxu0
    %2705 = vdwg.mxu0
    %vm2706 = vcmask 1024
    %2707 = vst.msk [vmem:[%s59] sm:$0x3] %vm2706, %v2701
    // Predicated region
    $region206: #{_lambda_.1} parent=1 // pred_check
      _
    $region207: #{_lambda_.1} parent=1 // pred_check_branch
      %2709 = sbr.rel (0) target = $region209
    $region208: #{_lambda_.1} parent=1 // pred_region
      _
    $region209: #{_lambda_.1} parent=1 // pred_fallthru
      _
    // Predicated region
    $region210: #{_lambda_.1} parent=1 // pred_check
      _
    $region211: #{_lambda_.1} parent=1 // pred_check_branch
      %2711 = sbr.rel (0) target = $region213
    $region212: #{_lambda_.1} parent=1 // pred_region
      _
    $region213: #{_lambda_.1} parent=1 // pred_fallthru
      _
    %2712 = vsyncpa [#allocation4], 1
    %2713 = vsyncpa [#allocation6], 1
    %2714 = vsyncpa [#allocation9], 1
    %2715 = vsyncpa [#allocation12], 1
    %2716 = vsyncpa [#allocation15], 1
    %2717 = vsyncpa [#allocation18], 1
    %2718 = vsyncpa [#allocation21], 1
    %2719 = vsyncpa [#allocation24], 1
    %2720 = vsyncpa [#allocation27], 1
    %2721 = vsyncpa [#allocation30], 1
    %2722 = vsyncpa [#allocation33], 1
    %2723 = vsyncpa [#allocation36], 1

</llo_original>
